<compile_context>
chip_gen: v7x
topology: tpu7x:2x2x1
jax: 0.10.0
libtpu: 0.0.40
codegen_flags: <defaults>
</compile_context>

<pallas_src>
import functools

import jax
import jax.numpy as jnp
from jax.experimental import pallas as pl
from jax.experimental.pallas import tpu as pltpu

RELU_CAP = 20.0  # the module's "ReLU" is nn.Hardtanh(0, 20)


# ----------------------------------------------------------------------------
# Fused Pallas kernel: whole Res2Net basic block, B images per grid step
# ----------------------------------------------------------------------------
def _res2net_block_kernel(p1_ref, x_ref, w1_ref, b1_ref, ws_ref, bs_ref, o_ref, *,
                          H, W, B, width, scale, nums):
    """p1_ref: (1, 9*C, B*HW) bf16  conv1 im2col patches (built in wrapper, DMA'd in)
       x_ref : (1, C,   B*HW) f32   input, channels-first, spatial+batch on lane axis
       w1_ref: (C, 9*C)       bf16  conv1 weight, BN scale folded (tap-major columns)
       b1_ref: (C, 1)         f32   conv1 folded BN bias
       ws_ref: (nums, width, 9*width) bf16  width-conv weights (BN scale folded)
       bs_ref: (nums, width, 1)       f32   width-conv folded BN biases
       o_ref : (1, C, B*HW)   f32   output (same layout as x_ref)
    """
    HW = H * W
    BHW = B * HW

    # Boundary masks, indexed by *destination* lane position.
    pos = jax.lax.broadcasted_iota(jnp.int32, (1, BHW), 1)
    xcol = pos % W
    mask_dx = {0: xcol != 0, 1: None, 2: xcol != (W - 1)}
    if B > 1:
        # Packed images: a +/-W lane shift wraps across image boundaries too.
        row_pos = pos % HW
        mask_dy = {0: row_pos >= W, 1: None, 2: row_pos < (HW - W)}
    else:
        # Single image per step: top/bottom rows are covered by the zero padding.
        mask_dy = {0: None, 1: None, 2: None}
    tap_mask = {}
    for dy in range(3):
        for dx in range(3):
            my, mx = mask_dy[dy], mask_dx[dx]
            if my is None:
                tap_mask[(dy, dx)] = mx
            elif mx is None:
                tap_mask[(dy, dx)] = my
            else:
                tap_mask[(dy, dx)] = jnp.logical_and(my, mx)

    def conv3x3_bn_act(v_bf16, w, b):
        """3x3 conv (stride 1, pad 1) + folded BN bias + Hardtanh(0, 20).

        v_bf16: (Cin, BHW) bf16; w: (Cout, 9*Cin) bf16; b: (Cout, 1) f32
        -> (Cout, BHW) f32
        """
        cin = v_bf16.shape[0]
        zpad = jnp.zeros((cin, W + 1), dtype=v_bf16.dtype)
        buf = jnp.concatenate([zpad, v_bf16, zpad], axis=1)        # (Cin, BHW + 2W + 2)
        pieces = []
        for dy in range(3):
            for dx in range(3):
                p = buf[:, dy * W + dx: dy * W + dx + BHW]
                m = tap_mask[(dy, dx)]
                if m is not None:
                    p = jnp.where(m, p, jnp.zeros_like(p))
                pieces.append(p)
        patches = jnp.concatenate(pieces, axis=0)                  # (9*Cin, BHW) bf16
        y = jnp.dot(w, patches, preferred_element_type=jnp.float32) + b
        return jnp.clip(y, 0.0, RELU_CAP)

    x = x_ref[0]                                                    # (C, BHW) f32

    # conv1 + bn1 + relu: patches were precomputed, so this is a single MXU matmul.
    out1 = jnp.dot(w1_ref[...], p1_ref[0],
                   preferred_element_type=jnp.float32) + b1_ref[...]
    out1 = jnp.clip(out1, 0.0, RELU_CAP)                            # (C, BHW) f32

    # Res2Net sequential width convs; every group gets residual + clip immediately and
    # groups are streamed to o_ref in >= 8-row sublane-aligned writes.
    rows_per_write = max(1, 8 // width) * width

    pending = []          # list of (row_start, (rows, BHW) f32), contiguous rows
    pending_rows = 0

    def flush():
        nonlocal pending, pending_rows
        if not pending:
            return
        start = pending[0][0]
        if len(pending) == 1:
            block = pending[0][1]
        else:
            block = jnp.concatenate([p for _, p in pending], axis=0)
        o_ref[0, start:start + block.shape[0], :] = block.astype(o_ref.dtype)
        pending = []
        pending_rows = 0

    sp = None
    for i in range(nums):
        lo = i * width
        g1 = out1[lo:lo + width, :]
        sp = g1 if i == 0 else sp + g1
        sp = conv3x3_bn_act(sp.astype(jnp.bfloat16), ws_ref[i], bs_ref[i])
        out_g = jnp.clip(sp + x[lo:lo + width, :], 0.0, RELU_CAP)
        pending.append((lo, out_g))
        pending_rows += width
        if pending_rows >= rows_per_write:
            flush()
    if scale != 1:
        lo = nums * width
        out_g = jnp.clip(out1[lo:lo + width, :] + x[lo:lo + width, :], 0.0, RELU_CAP)
        pending.append((lo, out_g))
        pending_rows += width
    flush()


# ----------------------------------------------------------------------------
# Wrapper: BN folding, im2col for conv1, layout packing, one pallas_call
# ----------------------------------------------------------------------------
def _fold_conv_bn(w_oihw, bn_scale):
    """(Cout, Cin, 3, 3) conv weight + per-channel BN scale -> (Cout, 9*Cin) bf16,
    columns ordered tap-major ((dy*3+dx)*Cin + cin) to match the kernel's patches."""
    cout, cin = w_oihw.shape[0], w_oihw.shape[1]
    w = jnp.transpose(w_oihw, (0, 2, 3, 1)).reshape(cout, 9 * cin)
    return (w * bn_scale[:, None]).astype(jnp.bfloat16)


def _im2col_3x3(x_nchw):
    """(N, C, H, W) -> (N, 9*C, H*W), tap-major rows matching _fold_conv_bn columns."""
    N, C, H, W = x_nchw.shape
    xp = jnp.pad(x_nchw, ((0, 0), (0, 0), (1, 1), (1, 1)))
    taps = [xp[:, :, dy:dy + H, dx:dx + W] for dy in range(3) for dx in range(3)]
    return jnp.stack(taps, axis=1).reshape(N, 9 * C, H * W)


def basic_block_res2net34(x_nchw, params, *, images_per_step=None):
    """Input/output NCHW (PyTorch convention); stride=1, downsample=None."""
    N, C, H, W = x_nchw.shape
    width, scale, nums = params["width"], params["scale"], params["nums"]
    planes = width * scale
    assert C == planes, "downsample=None requires inplanes == width*scale"
    HW = H * W

    # Fewer, fatter grid steps: pack B images along the lane axis of every matmul,
    # but keep >= 2 grid steps when N >= 2 so both v7x TensorCores get work.
    if images_per_step is None:
        target_lanes = 1024
        images_per_step = max(1, min(pl.cdiv(N, 2), max(1, target_lanes // HW)))
    B = int(images_per_step)
    steps = pl.cdiv(N, B)
    n_pad = steps * B

    x = x_nchw.astype(jnp.float32)
    if n_pad != N:
        x = jnp.concatenate([x, jnp.zeros((n_pad - N, C, H, W), jnp.float32)], axis=0)

    # conv1 im2col patches, built by XLA and streamed in through the BlockSpec pipeline.
    p1 = _im2col_3x3(x)                                            # (n_pad, 9C, HW) f32
    p1 = (p1.reshape(steps, B, 9 * C, HW).transpose(0, 2, 1, 3)
            .reshape(steps, 9 * C, B * HW).astype(jnp.bfloat16))
    x_res = (x.reshape(steps, B, C, HW).transpose(0, 2, 1, 3)
               .reshape(steps, C, B * HW))                         # f32 residual path

    w1 = _fold_conv_bn(params["w1"], params["s1"])                 # (C, 9C) bf16
    b1 = params["b1"].reshape(planes, 1).astype(jnp.float32)
    ws = jnp.stack([_fold_conv_bn(params["ws"][i], params["ss"][i])
                    for i in range(nums)])                         # (nums, w, 9w) bf16
    bs = jnp.stack([params["bs"][i].reshape(width, 1)
                    for i in range(nums)]).astype(jnp.float32)

    # VMEM budget: double-buffered pipeline blocks + (tiny) weights, with headroom.
    step_bytes = (2 * (9 * C * B * HW * 2)            # p1 (bf16), double-buffered
                  + 2 * 2 * (C * B * HW * 4)          # x_res + out (f32), double-buffered
                  + (planes * 9 * C + nums * width * 9 * width) * 2)
    vmem_limit = int(min(96 * 1024 * 1024, max(32 * 1024 * 1024, 8 * step_bytes)))

    kernel = functools.partial(_res2net_block_kernel, H=H, W=W, B=B,
                               width=width, scale=scale, nums=nums)
    out = pl.pallas_call(
        kernel,
        out_shape=jax.ShapeDtypeStruct((steps, planes, B * HW), jnp.float32),
        grid=(steps,),
        in_specs=[
            pl.BlockSpec((1, 9 * C, B * HW), lambda s: (s, 0, 0)),
            pl.BlockSpec((1, C, B * HW), lambda s: (s, 0, 0)),
            # Constant block indices: the pipeline fetches these once, no per-step DMA.
            pl.BlockSpec((planes, 9 * C), lambda s: (0, 0)),
            pl.BlockSpec((planes, 1), lambda s: (0, 0)),
            pl.BlockSpec((nums, width, 9 * width), lambda s: (0, 0, 0)),
            pl.BlockSpec((nums, width, 1), lambda s: (0, 0, 0)),
        ],
        out_specs=pl.BlockSpec((1, planes, B * HW), lambda s: (s, 0, 0)),
        compiler_params=pltpu.CompilerParams(
            dimension_semantics=("parallel",),        # step axis shards over v7x's 2 TCs
            vmem_limit_bytes=vmem_limit),
    )(p1, x_res, w1, b1, ws, bs)

    out = (out.reshape(steps, planes, B, HW).transpose(0, 2, 1, 3)
              .reshape(n_pad, planes, H, W))
    return out[:N]


# ----------------------------------------------------------------------------
# Parameters (deterministic, synthetic) + BN folding
# ----------------------------------------------------------------------------
def fold_bn(gamma, beta, mean, var, eps=1e-5):
    scale = gamma / jnp.sqrt(var + eps)
    return scale, beta - mean * scale


def make_params(key, inplanes, planes, scale=4):
    width = planes // 4                      # int(math.floor(planes / 4))
    nums = 1 if scale == 1 else scale - 1

    def conv_w(k, cout, cin):
        return 0.1 * jax.random.normal(k, (cout, cin, 3, 3), jnp.float32)

    def bn_params(k, c):
        k1, k2, k3, k4 = jax.random.split(k, 4)
        gamma = 1.0 + 0.1 * jax.random.normal(k1, (c,), jnp.float32)
        beta = 0.1 * jax.random.normal(k2, (c,), jnp.float32)
        mean = 0.1 * jax.random.normal(k3, (c,), jnp.float32)
        var = 1.0 + 0.5 * jax.random.uniform(k4, (c,), jnp.float32)
        return fold_bn(gamma, beta, mean, var)

    ks = jax.random.split(key, 2 + 2 * nums)
    w1 = conv_w(ks[0], width * scale, inplanes)
    s1, b1 = bn_params(ks[1], width * scale)
    ws, ss, bs = [], [], []
    for i in range(nums):
        ws.append(conv_w(ks[2 + 2 * i], width, width))
        s, b = bn_params(ks[3 + 2 * i], width)
        ss.append(s)
        bs.append(b)
    return dict(w1=w1, s1=s1, b1=b1, ws=ws, ss=ss, bs=bs,
                width=width, scale=scale, nums=nums)


# ----------------------------------------------------------------------------
# Pure-JAX reference (lax.conv, f32) for the correctness check
# ----------------------------------------------------------------------------
def _ref_conv3x3(x_nhwc, w_oihw):
    return jax.lax.conv_general_dilated(
        x_nhwc, jnp.transpose(w_oihw, (2, 3, 1, 0)),
        window_strides=(1, 1), padding=((1, 1), (1, 1)),
        dimension_numbers=("NHWC", "HWIO", "NHWC"))


def reference_forward(x_nchw, params):
    width, scale, nums = params["width"], params["scale"], params["nums"]
    x = jnp.transpose(x_nchw, (0, 2, 3, 1))

    def cba(inp, w, s, b):
        return jnp.clip(_ref_conv3x3(inp, w) * s + b, 0.0, RELU_CAP)

    out = cba(x, params["w1"], params["s1"], params["b1"])
    spx = [out[..., i * width:(i + 1) * width] for i in range(scale)]
    pieces = []
    sp = None
    for i in range(nums):
        sp = spx[i] if i == 0 else sp + spx[i]
        sp = cba(sp, params["ws"][i], params["ss"][i], params["bs"][i])
        pieces.append(sp)
    if scale != 1:
        pieces.append(spx[nums])
    out = jnp.concatenate(pieces, axis=-1)
    out = jnp.clip(out + x, 0.0, RELU_CAP)
    return jnp.transpose(out, (0, 3, 1, 2))


if __name__ == "__main__":
    key = jax.random.PRNGKey(0)
    k_x, k_p = jax.random.split(key)

    N, H, W = 2, 16, 16
    inplanes = planes = 16          # width = 4, scale = 4 -> width*scale == inplanes
    x = jax.random.normal(k_x, (N, inplanes, H, W), jnp.float32)
    params = make_params(k_p, inplanes, planes, scale=4)

    ref = jax.block_until_ready(reference_forward(x, params))

    # Default step split: 2 grid steps (one image each) -> both v7x TCs busy.
    out = jax.block_until_ready(basic_block_res2net34(x, params))
    assert out.shape == (N, planes, H, W)
    err = float(jnp.max(jnp.abs(out - ref)))
    # bf16 MXU inputs (f32 accumulation) loosen bit-closeness vs. the f32 reference.
    assert err < 1.5e-1, f"max abs err {err}"

    # Also exercise the batched-lane path (both images packed into one grid step).
    out2 = jax.block_until_ready(
        basic_block_res2net34(x, params, images_per_step=2))
    err2 = float(jnp.max(jnp.abs(out2 - ref)))
    assert err2 < 1.5e-1, f"max abs err (packed) {err2}"

    print("KERNEL_OK")
</pallas_src>

<mosaic_0001>
module attributes {stable_mosaic.version = 11 : i64} {
  func.func @_res2net_block_kernel(%arg0: i32, %arg1: memref<1x144x256xbf16, #tpu.memory_space<vmem>>, %arg2: memref<1x16x256xf32, #tpu.memory_space<vmem>>, %arg3: memref<16x144xbf16, #tpu.memory_space<vmem>>, %arg4: memref<16x1xf32, #tpu.memory_space<vmem>>, %arg5: memref<3x4x36xbf16, #tpu.memory_space<vmem>>, %arg6: memref<3x4x1xf32, #tpu.memory_space<vmem>>, %arg7: memref<1x16x256xf32, #tpu.memory_space<vmem>>) attributes {dimension_semantics = [#tpu.dimension_semantics<parallel>], iteration_bounds = array<i64: 2>, scalar_prefetch = 0 : i64, scratch_operands = 0 : i64, tpu.core_type = #tpu.core_type<tc>, window_params = [{transform_indices = @transform_0, window_bounds = array<i64: 1, 144, 256>}, {transform_indices = @transform_1, window_bounds = array<i64: 1, 16, 256>}, {pipeline_mode = #tpu.pipeline_mode<synchronous>, transform_indices = @transform_2, window_bounds = array<i64: 16, 144>}, {pipeline_mode = #tpu.pipeline_mode<synchronous>, transform_indices = @transform_3, window_bounds = array<i64: 16, 1>}, {pipeline_mode = #tpu.pipeline_mode<synchronous>, transform_indices = @transform_4, window_bounds = array<i64: 3, 4, 36>}, {pipeline_mode = #tpu.pipeline_mode<synchronous>, transform_indices = @transform_5, window_bounds = array<i64: 3, 4, 1>}, {transform_indices = @transform_6, window_bounds = array<i64: 1, 16, 256>}]} {
    %0 = tpu.iota {dimensions = array<i32: 1>} : vector<1x256xi32>
    %c16_i32 = arith.constant 16 : i32
    %c0_i32 = arith.constant 0 : i32
    %1 = arith.cmpi eq, %c16_i32, %c0_i32 : i32
    %c1_i32 = arith.constant 1 : i32
    %2 = arith.select %1, %c1_i32, %c16_i32 : i32
    %3 = vector.broadcast %2 : i32 to vector<1x256xi32>
    %4 = arith.remsi %0, %3 : vector<1x256xi32>
    %c0_i32_0 = arith.constant 0 : i32
    %5 = vector.broadcast %c0_i32_0 : i32 to vector<1x256xi32>
    %6 = arith.cmpi ne, %4, %5 : vector<1x256xi32>
    %c0_i32_1 = arith.constant 0 : i32
    %7 = vector.broadcast %c0_i32_1 : i32 to vector<1x256xi32>
    %8 = arith.cmpi slt, %4, %7 : vector<1x256xi32>
    %c0_i32_2 = arith.constant 0 : i32
    %9 = arith.cmpi slt, %2, %c0_i32_2 : i32
    %10 = vector.broadcast %9 : i1 to vector<1x256xi1>
    %11 = vector.broadcast %10 : vector<1x256xi1> to vector<1x256xi1>
    %12 = arith.xori %8, %11 : vector<1x256xi1>
    %13 = arith.andi %12, %6 : vector<1x256xi1>
    %14 = vector.broadcast %2 : i32 to vector<1x256xi32>
    %15 = arith.addi %4, %14 : vector<1x256xi32>
    %16 = arith.select %13, %15, %4 : vector<1x256xi1>, vector<1x256xi32>
    %c0_i32_3 = arith.constant 0 : i32
    %17 = vector.broadcast %c0_i32_3 : i32 to vector<1x256xi32>
    %18 = arith.cmpi ne, %16, %17 : vector<1x256xi32>
    %c15_i32 = arith.constant 15 : i32
    %19 = vector.broadcast %c15_i32 : i32 to vector<1x256xi32>
    %20 = arith.cmpi ne, %16, %19 : vector<1x256xi32>
    %c0 = arith.constant 0 : index
    %c0_4 = arith.constant 0 : index
    %c0_5 = arith.constant 0 : index
    %21 = vector.load %arg2[%c0, %c0_4, %c0_5] : memref<1x16x256xf32, #tpu.memory_space<vmem>>, vector<1x16x256xf32>
    %22 = vector.shape_cast %21 : vector<1x16x256xf32> to vector<16x256xf32>
    %c0_6 = arith.constant 0 : index
    %c0_7 = arith.constant 0 : index
    %23 = vector.load %arg3[%c0_6, %c0_7] : memref<16x144xbf16, #tpu.memory_space<vmem>>, vector<16x144xbf16>
    %c0_8 = arith.constant 0 : index
    %c0_9 = arith.constant 0 : index
    %c0_10 = arith.constant 0 : index
    %24 = vector.load %arg1[%c0_8, %c0_9, %c0_10] : memref<1x144x256xbf16, #tpu.memory_space<vmem>>, vector<1x144x256xbf16>
    %25 = vector.shape_cast %24 : vector<1x144x256xbf16> to vector<144x256xbf16>
    %cst = arith.constant dense<0.000000e+00> : vector<16x256xf32>
    %26 = tpu.matmul %23, %25, %cst {dimension_numbers = #tpu.dot_dimension_numbers<[1], [0], [0], [1], [0, 0, 1, 1], [], []>} : vector<16x144xbf16>, vector<144x256xbf16>, vector<16x256xf32> -> vector<16x256xf32>
    %c0_11 = arith.constant 0 : index
    %c0_12 = arith.constant 0 : index
    %27 = vector.load %arg4[%c0_11, %c0_12] : memref<16x1xf32, #tpu.memory_space<vmem>>, vector<16x1xf32>
    %28 = vector.broadcast %27 : vector<16x1xf32> to vector<16x256xf32>
    %29 = arith.addf %26, %28 : vector<16x256xf32>
    %cst_13 = arith.constant 0.000000e+00 : f32
    %cst_14 = arith.constant 2.000000e+01 : f32
    %30 = vector.broadcast %cst_13 : f32 to vector<16x256xf32>
    %31 = arith.maximumf %30, %29 : vector<16x256xf32>
    %32 = vector.broadcast %cst_14 : f32 to vector<16x256xf32>
    %33 = arith.minimumf %32, %31 : vector<16x256xf32>
    %34 = vector.extract_strided_slice %33 {offsets = [0, 0], sizes = [4, 256], strides = [1, 1]} : vector<16x256xf32> to vector<4x256xf32>
    %35 = arith.truncf %34 : vector<4x256xf32> to vector<4x256xbf16>
    %c0_15 = arith.constant 0 : index
    %c0_16 = arith.constant 0 : index
    %c0_17 = arith.constant 0 : index
    %36 = vector.load %arg5[%c0_15, %c0_16, %c0_17] : memref<3x4x36xbf16, #tpu.memory_space<vmem>>, vector<1x4x36xbf16>
    %37 = vector.shape_cast %36 : vector<1x4x36xbf16> to vector<4x36xbf16>
    %c0_18 = arith.constant 0 : index
    %c0_19 = arith.constant 0 : index
    %c0_20 = arith.constant 0 : index
    %38 = vector.load %arg6[%c0_18, %c0_19, %c0_20] : memref<3x4x1xf32, #tpu.memory_space<vmem>>, vector<1x4x1xf32>
    %39 = vector.shape_cast %38 : vector<1x4x1xf32> to vector<4x1xf32>
    %cst_21 = arith.constant 0.000000e+00 : bf16
    %40 = vector.broadcast %cst_21 : bf16 to vector<4x17xbf16>
    %41 = tpu.concatenate %40, %35, %40 in 1 : vector<4x17xbf16>, vector<4x256xbf16>, vector<4x17xbf16> -> vector<4x290xbf16>
    %42 = vector.extract_strided_slice %41 {offsets = [0, 0], sizes = [4, 256], strides = [1, 1]} : vector<4x290xbf16> to vector<4x256xbf16>
    %cst_22 = arith.constant 0.000000e+00 : bf16
    %43 = vector.broadcast %cst_22 : bf16 to vector<4x256xbf16>
    %44 = vector.shape_cast %18 : vector<1x256xi1> to vector<1x256xi1>
    %45 = vector.broadcast %44 : vector<1x256xi1> to vector<4x256xi1>
    %46 = arith.select %45, %42, %43 : vector<4x256xi1>, vector<4x256xbf16>
    %47 = vector.extract_strided_slice %41 {offsets = [0, 1], sizes = [4, 256], strides = [1, 1]} : vector<4x290xbf16> to vector<4x256xbf16>
    %48 = vector.extract_strided_slice %41 {offsets = [0, 2], sizes = [4, 256], strides = [1, 1]} : vector<4x290xbf16> to vector<4x256xbf16>
    %cst_23 = arith.constant 0.000000e+00 : bf16
    %49 = vector.broadcast %cst_23 : bf16 to vector<4x256xbf16>
    %50 = vector.shape_cast %20 : vector<1x256xi1> to vector<1x256xi1>
    %51 = vector.broadcast %50 : vector<1x256xi1> to vector<4x256xi1>
    %52 = arith.select %51, %48, %49 : vector<4x256xi1>, vector<4x256xbf16>
    %53 = vector.extract_strided_slice %41 {offsets = [0, 16], sizes = [4, 256], strides = [1, 1]} : vector<4x290xbf16> to vector<4x256xbf16>
    %cst_24 = arith.constant 0.000000e+00 : bf16
    %54 = vector.broadcast %cst_24 : bf16 to vector<4x256xbf16>
    %55 = vector.shape_cast %18 : vector<1x256xi1> to vector<1x256xi1>
    %56 = vector.broadcast %55 : vector<1x256xi1> to vector<4x256xi1>
    %57 = arith.select %56, %53, %54 : vector<4x256xi1>, vector<4x256xbf16>
    %58 = vector.extract_strided_slice %41 {offsets = [0, 17], sizes = [4, 256], strides = [1, 1]} : vector<4x290xbf16> to vector<4x256xbf16>
    %59 = vector.extract_strided_slice %41 {offsets = [0, 18], sizes = [4, 256], strides = [1, 1]} : vector<4x290xbf16> to vector<4x256xbf16>
    %cst_25 = arith.constant 0.000000e+00 : bf16
    %60 = vector.broadcast %cst_25 : bf16 to vector<4x256xbf16>
    %61 = vector.shape_cast %20 : vector<1x256xi1> to vector<1x256xi1>
    %62 = vector.broadcast %61 : vector<1x256xi1> to vector<4x256xi1>
    %63 = arith.select %62, %59, %60 : vector<4x256xi1>, vector<4x256xbf16>
    %64 = vector.extract_strided_slice %41 {offsets = [0, 32], sizes = [4, 256], strides = [1, 1]} : vector<4x290xbf16> to vector<4x256xbf16>
    %cst_26 = arith.constant 0.000000e+00 : bf16
    %65 = vector.broadcast %cst_26 : bf16 to vector<4x256xbf16>
    %66 = vector.shape_cast %18 : vector<1x256xi1> to vector<1x256xi1>
    %67 = vector.broadcast %66 : vector<1x256xi1> to vector<4x256xi1>
    %68 = arith.select %67, %64, %65 : vector<4x256xi1>, vector<4x256xbf16>
    %69 = vector.extract_strided_slice %41 {offsets = [0, 33], sizes = [4, 256], strides = [1, 1]} : vector<4x290xbf16> to vector<4x256xbf16>
    %70 = vector.extract_strided_slice %41 {offsets = [0, 34], sizes = [4, 256], strides = [1, 1]} : vector<4x290xbf16> to vector<4x256xbf16>
    %cst_27 = arith.constant 0.000000e+00 : bf16
    %71 = vector.broadcast %cst_27 : bf16 to vector<4x256xbf16>
    %72 = vector.shape_cast %20 : vector<1x256xi1> to vector<1x256xi1>
    %73 = vector.broadcast %72 : vector<1x256xi1> to vector<4x256xi1>
    %74 = arith.select %73, %70, %71 : vector<4x256xi1>, vector<4x256xbf16>
    %75 = tpu.concatenate %46, %47, %52, %57, %58, %63, %68, %69, %74 in 0 : vector<4x256xbf16>, vector<4x256xbf16>, vector<4x256xbf16>, vector<4x256xbf16>, vector<4x256xbf16>, vector<4x256xbf16>, vector<4x256xbf16>, vector<4x256xbf16>, vector<4x256xbf16> -> vector<36x256xbf16>
    %cst_28 = arith.constant dense<0.000000e+00> : vector<4x256xf32>
    %76 = tpu.matmul %37, %75, %cst_28 {dimension_numbers = #tpu.dot_dimension_numbers<[1], [0], [0], [1], [0, 0, 1, 1], [], []>} : vector<4x36xbf16>, vector<36x256xbf16>, vector<4x256xf32> -> vector<4x256xf32>
    %77 = vector.broadcast %39 : vector<4x1xf32> to vector<4x256xf32>
    %78 = arith.addf %76, %77 : vector<4x256xf32>
    %cst_29 = arith.constant 0.000000e+00 : f32
    %cst_30 = arith.constant 2.000000e+01 : f32
    %79 = vector.broadcast %cst_29 : f32 to vector<4x256xf32>
    %80 = arith.maximumf %79, %78 : vector<4x256xf32>
    %81 = vector.broadcast %cst_30 : f32 to vector<4x256xf32>
    %82 = arith.minimumf %81, %80 : vector<4x256xf32>
    %83 = vector.extract_strided_slice %22 {offsets = [0, 0], sizes = [4, 256], strides = [1, 1]} : vector<16x256xf32> to vector<4x256xf32>
    %84 = arith.addf %82, %83 : vector<4x256xf32>
    %cst_31 = arith.constant 0.000000e+00 : f32
    %cst_32 = arith.constant 2.000000e+01 : f32
    %85 = vector.broadcast %cst_31 : f32 to vector<4x256xf32>
    %86 = arith.maximumf %85, %84 : vector<4x256xf32>
    %87 = vector.broadcast %cst_32 : f32 to vector<4x256xf32>
    %88 = arith.minimumf %87, %86 : vector<4x256xf32>
    %89 = vector.extract_strided_slice %33 {offsets = [4, 0], sizes = [4, 256], strides = [1, 1]} : vector<16x256xf32> to vector<4x256xf32>
    %90 = arith.addf %82, %89 : vector<4x256xf32>
    %91 = arith.truncf %90 : vector<4x256xf32> to vector<4x256xbf16>
    %c1 = arith.constant 1 : index
    %c0_33 = arith.constant 0 : index
    %c0_34 = arith.constant 0 : index
    %92 = vector.load %arg5[%c1, %c0_33, %c0_34] : memref<3x4x36xbf16, #tpu.memory_space<vmem>>, vector<1x4x36xbf16>
    %93 = vector.shape_cast %92 : vector<1x4x36xbf16> to vector<4x36xbf16>
    %c1_35 = arith.constant 1 : index
    %c0_36 = arith.constant 0 : index
    %c0_37 = arith.constant 0 : index
    %94 = vector.load %arg6[%c1_35, %c0_36, %c0_37] : memref<3x4x1xf32, #tpu.memory_space<vmem>>, vector<1x4x1xf32>
    %95 = vector.shape_cast %94 : vector<1x4x1xf32> to vector<4x1xf32>
    %cst_38 = arith.constant 0.000000e+00 : bf16
    %96 = vector.broadcast %cst_38 : bf16 to vector<4x17xbf16>
    %97 = tpu.concatenate %96, %91, %96 in 1 : vector<4x17xbf16>, vector<4x256xbf16>, vector<4x17xbf16> -> vector<4x290xbf16>
    %98 = vector.extract_strided_slice %97 {offsets = [0, 0], sizes = [4, 256], strides = [1, 1]} : vector<4x290xbf16> to vector<4x256xbf16>
    %cst_39 = arith.constant 0.000000e+00 : bf16
    %99 = vector.broadcast %cst_39 : bf16 to vector<4x256xbf16>
    %100 = vector.shape_cast %18 : vector<1x256xi1> to vector<1x256xi1>
    %101 = vector.broadcast %100 : vector<1x256xi1> to vector<4x256xi1>
    %102 = arith.select %101, %98, %99 : vector<4x256xi1>, vector<4x256xbf16>
    %103 = vector.extract_strided_slice %97 {offsets = [0, 1], sizes = [4, 256], strides = [1, 1]} : vector<4x290xbf16> to vector<4x256xbf16>
    %104 = vector.extract_strided_slice %97 {offsets = [0, 2], sizes = [4, 256], strides = [1, 1]} : vector<4x290xbf16> to vector<4x256xbf16>
    %cst_40 = arith.constant 0.000000e+00 : bf16
    %105 = vector.broadcast %cst_40 : bf16 to vector<4x256xbf16>
    %106 = vector.shape_cast %20 : vector<1x256xi1> to vector<1x256xi1>
    %107 = vector.broadcast %106 : vector<1x256xi1> to vector<4x256xi1>
    %108 = arith.select %107, %104, %105 : vector<4x256xi1>, vector<4x256xbf16>
    %109 = vector.extract_strided_slice %97 {offsets = [0, 16], sizes = [4, 256], strides = [1, 1]} : vector<4x290xbf16> to vector<4x256xbf16>
    %cst_41 = arith.constant 0.000000e+00 : bf16
    %110 = vector.broadcast %cst_41 : bf16 to vector<4x256xbf16>
    %111 = vector.shape_cast %18 : vector<1x256xi1> to vector<1x256xi1>
    %112 = vector.broadcast %111 : vector<1x256xi1> to vector<4x256xi1>
    %113 = arith.select %112, %109, %110 : vector<4x256xi1>, vector<4x256xbf16>
    %114 = vector.extract_strided_slice %97 {offsets = [0, 17], sizes = [4, 256], strides = [1, 1]} : vector<4x290xbf16> to vector<4x256xbf16>
    %115 = vector.extract_strided_slice %97 {offsets = [0, 18], sizes = [4, 256], strides = [1, 1]} : vector<4x290xbf16> to vector<4x256xbf16>
    %cst_42 = arith.constant 0.000000e+00 : bf16
    %116 = vector.broadcast %cst_42 : bf16 to vector<4x256xbf16>
    %117 = vector.shape_cast %20 : vector<1x256xi1> to vector<1x256xi1>
    %118 = vector.broadcast %117 : vector<1x256xi1> to vector<4x256xi1>
    %119 = arith.select %118, %115, %116 : vector<4x256xi1>, vector<4x256xbf16>
    %120 = vector.extract_strided_slice %97 {offsets = [0, 32], sizes = [4, 256], strides = [1, 1]} : vector<4x290xbf16> to vector<4x256xbf16>
    %cst_43 = arith.constant 0.000000e+00 : bf16
    %121 = vector.broadcast %cst_43 : bf16 to vector<4x256xbf16>
    %122 = vector.shape_cast %18 : vector<1x256xi1> to vector<1x256xi1>
    %123 = vector.broadcast %122 : vector<1x256xi1> to vector<4x256xi1>
    %124 = arith.select %123, %120, %121 : vector<4x256xi1>, vector<4x256xbf16>
    %125 = vector.extract_strided_slice %97 {offsets = [0, 33], sizes = [4, 256], strides = [1, 1]} : vector<4x290xbf16> to vector<4x256xbf16>
    %126 = vector.extract_strided_slice %97 {offsets = [0, 34], sizes = [4, 256], strides = [1, 1]} : vector<4x290xbf16> to vector<4x256xbf16>
    %cst_44 = arith.constant 0.000000e+00 : bf16
    %127 = vector.broadcast %cst_44 : bf16 to vector<4x256xbf16>
    %128 = vector.shape_cast %20 : vector<1x256xi1> to vector<1x256xi1>
    %129 = vector.broadcast %128 : vector<1x256xi1> to vector<4x256xi1>
    %130 = arith.select %129, %126, %127 : vector<4x256xi1>, vector<4x256xbf16>
    %131 = tpu.concatenate %102, %103, %108, %113, %114, %119, %124, %125, %130 in 0 : vector<4x256xbf16>, vector<4x256xbf16>, vector<4x256xbf16>, vector<4x256xbf16>, vector<4x256xbf16>, vector<4x256xbf16>, vector<4x256xbf16>, vector<4x256xbf16>, vector<4x256xbf16> -> vector<36x256xbf16>
    %cst_45 = arith.constant dense<0.000000e+00> : vector<4x256xf32>
    %132 = tpu.matmul %93, %131, %cst_45 {dimension_numbers = #tpu.dot_dimension_numbers<[1], [0], [0], [1], [0, 0, 1, 1], [], []>} : vector<4x36xbf16>, vector<36x256xbf16>, vector<4x256xf32> -> vector<4x256xf32>
    %133 = vector.broadcast %95 : vector<4x1xf32> to vector<4x256xf32>
    %134 = arith.addf %132, %133 : vector<4x256xf32>
    %cst_46 = arith.constant 0.000000e+00 : f32
    %cst_47 = arith.constant 2.000000e+01 : f32
    %135 = vector.broadcast %cst_46 : f32 to vector<4x256xf32>
    %136 = arith.maximumf %135, %134 : vector<4x256xf32>
    %137 = vector.broadcast %cst_47 : f32 to vector<4x256xf32>
    %138 = arith.minimumf %137, %136 : vector<4x256xf32>
    %139 = vector.extract_strided_slice %22 {offsets = [4, 0], sizes = [4, 256], strides = [1, 1]} : vector<16x256xf32> to vector<4x256xf32>
    %140 = arith.addf %138, %139 : vector<4x256xf32>
    %cst_48 = arith.constant 0.000000e+00 : f32
    %cst_49 = arith.constant 2.000000e+01 : f32
    %141 = vector.broadcast %cst_48 : f32 to vector<4x256xf32>
    %142 = arith.maximumf %141, %140 : vector<4x256xf32>
    %143 = vector.broadcast %cst_49 : f32 to vector<4x256xf32>
    %144 = arith.minimumf %143, %142 : vector<4x256xf32>
    %145 = tpu.concatenate %88, %144 in 0 : vector<4x256xf32>, vector<4x256xf32> -> vector<8x256xf32>
    %c0_50 = arith.constant 0 : index
    %c0_51 = arith.constant 0 : index
    %c0_52 = arith.constant 0 : index
    %146 = vector.load %arg7[%c0_50, %c0_51, %c0_52] : memref<1x16x256xf32, #tpu.memory_space<vmem>>, vector<1x8x256xf32>
    %147 = vector.shape_cast %146 : vector<1x8x256xf32> to vector<8x256xf32>
    %148 = vector.shape_cast %145 : vector<8x256xf32> to vector<1x8x256xf32>
    tpu.vector_store %arg7[%c0_50, %c0_51, %c0_52], %148 {strides = array<i32>} : memref<1x16x256xf32, #tpu.memory_space<vmem>>, vector<1x8x256xf32>,
    %149 = vector.extract_strided_slice %33 {offsets = [8, 0], sizes = [4, 256], strides = [1, 1]} : vector<16x256xf32> to vector<4x256xf32>
    %150 = arith.addf %138, %149 : vector<4x256xf32>
    %151 = arith.truncf %150 : vector<4x256xf32> to vector<4x256xbf16>
    %c2 = arith.constant 2 : index
    %c0_53 = arith.constant 0 : index
    %c0_54 = arith.constant 0 : index
    %152 = vector.load %arg5[%c2, %c0_53, %c0_54] : memref<3x4x36xbf16, #tpu.memory_space<vmem>>, vector<1x4x36xbf16>
    %153 = vector.shape_cast %152 : vector<1x4x36xbf16> to vector<4x36xbf16>
    %c2_55 = arith.constant 2 : index
    %c0_56 = arith.constant 0 : index
    %c0_57 = arith.constant 0 : index
    %154 = vector.load %arg6[%c2_55, %c0_56, %c0_57] : memref<3x4x1xf32, #tpu.memory_space<vmem>>, vector<1x4x1xf32>
    %155 = vector.shape_cast %154 : vector<1x4x1xf32> to vector<4x1xf32>
    %cst_58 = arith.constant 0.000000e+00 : bf16
    %156 = vector.broadcast %cst_58 : bf16 to vector<4x17xbf16>
    %157 = tpu.concatenate %156, %151, %156 in 1 : vector<4x17xbf16>, vector<4x256xbf16>, vector<4x17xbf16> -> vector<4x290xbf16>
    %158 = vector.extract_strided_slice %157 {offsets = [0, 0], sizes = [4, 256], strides = [1, 1]} : vector<4x290xbf16> to vector<4x256xbf16>
    %cst_59 = arith.constant 0.000000e+00 : bf16
    %159 = vector.broadcast %cst_59 : bf16 to vector<4x256xbf16>
    %160 = vector.shape_cast %18 : vector<1x256xi1> to vector<1x256xi1>
    %161 = vector.broadcast %160 : vector<1x256xi1> to vector<4x256xi1>
    %162 = arith.select %161, %158, %159 : vector<4x256xi1>, vector<4x256xbf16>
    %163 = vector.extract_strided_slice %157 {offsets = [0, 1], sizes = [4, 256], strides = [1, 1]} : vector<4x290xbf16> to vector<4x256xbf16>
    %164 = vector.extract_strided_slice %157 {offsets = [0, 2], sizes = [4, 256], strides = [1, 1]} : vector<4x290xbf16> to vector<4x256xbf16>
    %cst_60 = arith.constant 0.000000e+00 : bf16
    %165 = vector.broadcast %cst_60 : bf16 to vector<4x256xbf16>
    %166 = vector.shape_cast %20 : vector<1x256xi1> to vector<1x256xi1>
    %167 = vector.broadcast %166 : vector<1x256xi1> to vector<4x256xi1>
    %168 = arith.select %167, %164, %165 : vector<4x256xi1>, vector<4x256xbf16>
    %169 = vector.extract_strided_slice %157 {offsets = [0, 16], sizes = [4, 256], strides = [1, 1]} : vector<4x290xbf16> to vector<4x256xbf16>
    %cst_61 = arith.constant 0.000000e+00 : bf16
    %170 = vector.broadcast %cst_61 : bf16 to vector<4x256xbf16>
    %171 = vector.shape_cast %18 : vector<1x256xi1> to vector<1x256xi1>
    %172 = vector.broadcast %171 : vector<1x256xi1> to vector<4x256xi1>
    %173 = arith.select %172, %169, %170 : vector<4x256xi1>, vector<4x256xbf16>
    %174 = vector.extract_strided_slice %157 {offsets = [0, 17], sizes = [4, 256], strides = [1, 1]} : vector<4x290xbf16> to vector<4x256xbf16>
    %175 = vector.extract_strided_slice %157 {offsets = [0, 18], sizes = [4, 256], strides = [1, 1]} : vector<4x290xbf16> to vector<4x256xbf16>
    %cst_62 = arith.constant 0.000000e+00 : bf16
    %176 = vector.broadcast %cst_62 : bf16 to vector<4x256xbf16>
    %177 = vector.shape_cast %20 : vector<1x256xi1> to vector<1x256xi1>
    %178 = vector.broadcast %177 : vector<1x256xi1> to vector<4x256xi1>
    %179 = arith.select %178, %175, %176 : vector<4x256xi1>, vector<4x256xbf16>
    %180 = vector.extract_strided_slice %157 {offsets = [0, 32], sizes = [4, 256], strides = [1, 1]} : vector<4x290xbf16> to vector<4x256xbf16>
    %cst_63 = arith.constant 0.000000e+00 : bf16
    %181 = vector.broadcast %cst_63 : bf16 to vector<4x256xbf16>
    %182 = vector.shape_cast %18 : vector<1x256xi1> to vector<1x256xi1>
    %183 = vector.broadcast %182 : vector<1x256xi1> to vector<4x256xi1>
    %184 = arith.select %183, %180, %181 : vector<4x256xi1>, vector<4x256xbf16>
    %185 = vector.extract_strided_slice %157 {offsets = [0, 33], sizes = [4, 256], strides = [1, 1]} : vector<4x290xbf16> to vector<4x256xbf16>
    %186 = vector.extract_strided_slice %157 {offsets = [0, 34], sizes = [4, 256], strides = [1, 1]} : vector<4x290xbf16> to vector<4x256xbf16>
    %cst_64 = arith.constant 0.000000e+00 : bf16
    %187 = vector.broadcast %cst_64 : bf16 to vector<4x256xbf16>
    %188 = vector.shape_cast %20 : vector<1x256xi1> to vector<1x256xi1>
    %189 = vector.broadcast %188 : vector<1x256xi1> to vector<4x256xi1>
    %190 = arith.select %189, %186, %187 : vector<4x256xi1>, vector<4x256xbf16>
    %191 = tpu.concatenate %162, %163, %168, %173, %174, %179, %184, %185, %190 in 0 : vector<4x256xbf16>, vector<4x256xbf16>, vector<4x256xbf16>, vector<4x256xbf16>, vector<4x256xbf16>, vector<4x256xbf16>, vector<4x256xbf16>, vector<4x256xbf16>, vector<4x256xbf16> -> vector<36x256xbf16>
    %cst_65 = arith.constant dense<0.000000e+00> : vector<4x256xf32>
    %192 = tpu.matmul %153, %191, %cst_65 {dimension_numbers = #tpu.dot_dimension_numbers<[1], [0], [0], [1], [0, 0, 1, 1], [], []>} : vector<4x36xbf16>, vector<36x256xbf16>, vector<4x256xf32> -> vector<4x256xf32>
    %193 = vector.broadcast %155 : vector<4x1xf32> to vector<4x256xf32>
    %194 = arith.addf %192, %193 : vector<4x256xf32>
    %cst_66 = arith.constant 0.000000e+00 : f32
    %cst_67 = arith.constant 2.000000e+01 : f32
    %195 = vector.broadcast %cst_66 : f32 to vector<4x256xf32>
    %196 = arith.maximumf %195, %194 : vector<4x256xf32>
    %197 = vector.broadcast %cst_67 : f32 to vector<4x256xf32>
    %198 = arith.minimumf %197, %196 : vector<4x256xf32>
    %199 = vector.extract_strided_slice %22 {offsets = [8, 0], sizes = [4, 256], strides = [1, 1]} : vector<16x256xf32> to vector<4x256xf32>
    %200 = arith.addf %198, %199 : vector<4x256xf32>
    %cst_68 = arith.constant 0.000000e+00 : f32
    %cst_69 = arith.constant 2.000000e+01 : f32
    %201 = vector.broadcast %cst_68 : f32 to vector<4x256xf32>
    %202 = arith.maximumf %201, %200 : vector<4x256xf32>
    %203 = vector.broadcast %cst_69 : f32 to vector<4x256xf32>
    %204 = arith.minimumf %203, %202 : vector<4x256xf32>
    %205 = vector.extract_strided_slice %33 {offsets = [12, 0], sizes = [4, 256], strides = [1, 1]} : vector<16x256xf32> to vector<4x256xf32>
    %206 = vector.extract_strided_slice %22 {offsets = [12, 0], sizes = [4, 256], strides = [1, 1]} : vector<16x256xf32> to vector<4x256xf32>
    %207 = arith.addf %205, %206 : vector<4x256xf32>
    %cst_70 = arith.constant 0.000000e+00 : f32
    %cst_71 = arith.constant 2.000000e+01 : f32
    %208 = vector.broadcast %cst_70 : f32 to vector<4x256xf32>
    %209 = arith.maximumf %208, %207 : vector<4x256xf32>
    %210 = vector.broadcast %cst_71 : f32 to vector<4x256xf32>
    %211 = arith.minimumf %210, %209 : vector<4x256xf32>
    %212 = tpu.concatenate %204, %211 in 0 : vector<4x256xf32>, vector<4x256xf32> -> vector<8x256xf32>
    %c0_72 = arith.constant 0 : index
    %c8 = arith.constant 8 : index
    %c0_73 = arith.constant 0 : index
    %213 = vector.load %arg7[%c0_72, %c8, %c0_73] : memref<1x16x256xf32, #tpu.memory_space<vmem>>, vector<1x8x256xf32>
    %214 = vector.shape_cast %213 : vector<1x8x256xf32> to vector<8x256xf32>
    %215 = vector.shape_cast %212 : vector<8x256xf32> to vector<1x8x256xf32>
    tpu.vector_store %arg7[%c0_72, %c8, %c0_73], %215 {strides = array<i32>} : memref<1x16x256xf32, #tpu.memory_space<vmem>>, vector<1x8x256xf32>,
    return
  }
  func.func @transform_0(%arg0: i32) -> (i32, i32, i32) {
    %c0_i32 = arith.constant 0 : i32
    %c0_i32_0 = arith.constant 0 : i32
    %c0_i32_1 = arith.constant 0 : i32
    return %arg0, %c0_i32, %c0_i32_0 : i32, i32, i32
  }
  func.func @transform_1(%arg0: i32) -> (i32, i32, i32) {
    %c0_i32 = arith.constant 0 : i32
    %c0_i32_0 = arith.constant 0 : i32
    %c0_i32_1 = arith.constant 0 : i32
    return %arg0, %c0_i32, %c0_i32_0 : i32, i32, i32
  }
  func.func @transform_2(%arg0: i32) -> (i32, i32) {
    %c0_i32 = arith.constant 0 : i32
    %c0_i32_0 = arith.constant 0 : i32
    %c0_i32_1 = arith.constant 0 : i32
    return %c0_i32, %c0_i32_0 : i32, i32
  }
  func.func @transform_3(%arg0: i32) -> (i32, i32) {
    %c0_i32 = arith.constant 0 : i32
    %c0_i32_0 = arith.constant 0 : i32
    %c0_i32_1 = arith.constant 0 : i32
    return %c0_i32, %c0_i32_0 : i32, i32
  }
  func.func @transform_4(%arg0: i32) -> (i32, i32, i32) {
    %c0_i32 = arith.constant 0 : i32
    %c0_i32_0 = arith.constant 0 : i32
    %c0_i32_1 = arith.constant 0 : i32
    %c0_i32_2 = arith.constant 0 : i32
    return %c0_i32, %c0_i32_0, %c0_i32_1 : i32, i32, i32
  }
  func.func @transform_5(%arg0: i32) -> (i32, i32, i32) {
    %c0_i32 = arith.constant 0 : i32
    %c0_i32_0 = arith.constant 0 : i32
    %c0_i32_1 = arith.constant 0 : i32
    %c0_i32_2 = arith.constant 0 : i32
    return %c0_i32, %c0_i32_0, %c0_i32_1 : i32, i32, i32
  }
  func.func @transform_6(%arg0: i32) -> (i32, i32, i32) {
    %c0_i32 = arith.constant 0 : i32
    %c0_i32_0 = arith.constant 0 : i32
    %c0_i32_1 = arith.constant 0 : i32
    return %arg0, %c0_i32, %c0_i32_0 : i32, i32, i32
  }
}

</mosaic_0001>

<llo_original>
// kernel: tpu_custom_call.1
$region0: #{tpu_custom_call.1}
  #allocation0 [shape = 'u32[]', space=smem, size = 0x4, offset = 0x4, fixed_abs, tag = 'smem constant byte address 0x4 - core index']
  #allocation1 [shape = 'u32[144,128]{1,0:T(1,128)}', space=vmem, size = 0x12000, scoped, tag = 'internal scratch']
  %s0 = inlined_call_operand.hbm [shape: bf16[2,144,256], index: 0, kind: input, shape index: {}]
  %s1 = inlined_call_operand.hbm [shape: f32[2,16,256], index: 1, kind: input, shape index: {}]
  %s2 = inlined_call_operand.vmem [shape: bf16[16,144], index: 2, kind: input, shape index: {}]
  %s3 = inlined_call_operand.vmem [shape: f32[16,1], index: 3, kind: input, shape index: {}]
  %s4 = inlined_call_operand.vmem [shape: bf16[3,4,36], index: 4, kind: input, shape index: {}]
  %s5 = inlined_call_operand.vmem [shape: f32[3,4,1], index: 5, kind: input, shape index: {}]
  %s6 = inlined_call_operand.hbm [shape: f32[2,16,256], index: 6, kind: output, shape index: {}]
  %s7 = sld [smem:[#allocation0]]
  $region65: #{tpu_custom_call.1} parent=0
    _
  %s9 = ssub.s32 1, %s7
  %s10 = scalar_select 0, %s9, %s7
  $region1: #{tpu_custom_call.1} parent=0
    #allocation2 [shape = 'u8[147456]{0}', space=vmem, size = 0x24000, scoped, tag = 'input window, operand 0']
    #allocation3 [shape = 's32[2]{0}', space=sflag, size = 0x8, scoped, tag = 'scoped memory for tpu_custom_call.1']
    #allocation4 [shape = 's32[2]{0}', space=sflag, size = 0x8, scoped, tag = 'scoped memory for tpu_custom_call.1']
    #allocation5 [shape = 'u8[32768]{0}', space=vmem, size = 0x8000, scoped, tag = 'input window, operand 1']
    #allocation6 [shape = 's32[2]{0}', space=sflag, size = 0x8, scoped, tag = 'scoped memory for tpu_custom_call.1']
    #allocation7 [shape = 'u8[32768]{0}', space=vmem, size = 0x8000, scoped, tag = 'output window, operand 0']
    %11 = vsyncpa [#allocation3], 0
    %s12 = scalar_lea.sflag [#allocation3], 1
    %13 = vsyncpa %s12, 0
    %14 = vsyncpa [#allocation6], 0
    %s15 = scalar_lea.sflag [#allocation6], 1
    %16 = vsyncpa %s15, 0
    %17 = vsyncpa [#allocation4], 0
    %s18 = scalar_lea.sflag [#allocation4], 1
    %19 = vsyncpa %s18, 0
    loop: start=0, step=1, limit=4
    $region2: #{tpu_custom_call.1} parent=1 // loop_pre_header
      _
    $region3: #{tpu_custom_call.1} parent=1 // loop_header
      %s21 = sphi 0, %s25
      %p22 = scmp.ge.s32.totalorder %s21, 4
      %s31 = sphi 0, %s33
      %s34 = sphi 0, %s31
      %s35 = sphi 0, %s34
      %s51 = sphi 0, %s35
      %s57 = sphi 0, %s59
      %s60 = sphi 0, %s57
      %s61 = sphi 0, %s60
      %s77 = sphi 0, %s61
      %s81 = sphi 0, %s81
      %s83 = sphi 0, %s81
      %s84 = sphi 0, %s83
      %s98 = sphi 0, %s84
      %s102 = sphi 0, %s102
      %s104 = sphi 0, %s102
      %s105 = sphi 0, %s104
      %s119 = sphi 0, %s105
      %s123 = sphi 0, %s123
      %s125 = sphi 0, %s123
      %s126 = sphi 0, %s125
      %s140 = sphi 0, %s126
      %s144 = sphi 0, %s144
      %s146 = sphi 0, %s144
      %s147 = sphi 0, %s146
      %s161 = sphi 0, %s147
      %s167 = sphi 0, %s169
      %s170 = sphi 0, %s167
      %s171 = sphi 0, %s170
      %s187 = sphi 0, %s171
    $region4: #{tpu_custom_call.1} parent=1 // loop_header_branch
      %24 = sbr.rel (%p22) target = $region8
    $region5: #{tpu_custom_call.1} parent=1 // loop_body
      %s26 = ssub.s32 %s21, 1
      %s27 = ssub.s32 %s21, 2
      %s28 = sadd.s32 %s21, 1
      %s29 = ssub.s32 %s21, %s28
      %p30 = scmp.eq.s32.totalorder %s29, 0
      %s32 = sadd.s32 %s31, 1
      %s33 = scalar_select %p30, %s31, %s32
      %p36 = pneg %p30
      %p37 = scmp.eq.s32.totalorder %s21, 1
      %p38 = por %p36, %p37
      %p39 = scmp.ne.s32.totalorder %s31, %s34
      %p40 = scmp.eq.s32.totalorder %s21, 0
      %p41 = por %p39, %p40
      %p42 = scmp.ne.s32.totalorder %s31, %s34
      %p43 = scmp.eq.s32.totalorder %s26, 1
      %p44 = por %p42, %p43
      %p45 = scmp.ne.s32.totalorder %s34, %s35
      %p46 = scmp.eq.s32.totalorder %s26, 0
      %p47 = por %p45, %p46
      %p48 = scmp.ne.s32.totalorder %s34, %s35
      %p49 = scmp.eq.s32.totalorder %s27, 1
      %p50 = por %p48, %p49
      %p52 = scmp.ne.s32.totalorder %s35, %s51
      %p53 = scmp.eq.s32.totalorder %s27, 0
      %p54 = por %p52, %p53
      %s55 = ssub.s32 %s21, %s28
      %p56 = scmp.eq.s32.totalorder %s55, 0
      %s58 = sadd.s32 %s57, 1
      %s59 = scalar_select %p56, %s57, %s58
      %p62 = pneg %p56
      %p63 = scmp.eq.s32.totalorder %s21, 1
      %p64 = por %p62, %p63
      %p65 = scmp.ne.s32.totalorder %s57, %s60
      %p66 = scmp.eq.s32.totalorder %s21, 0
      %p67 = por %p65, %p66
      %p68 = scmp.ne.s32.totalorder %s57, %s60
      %p69 = scmp.eq.s32.totalorder %s26, 1
      %p70 = por %p68, %p69
      %p71 = scmp.ne.s32.totalorder %s60, %s61
      %p72 = scmp.eq.s32.totalorder %s26, 0
      %p73 = por %p71, %p72
      %p74 = scmp.ne.s32.totalorder %s60, %s61
      %p75 = scmp.eq.s32.totalorder %s27, 1
      %p76 = por %p74, %p75
      %p78 = scmp.ne.s32.totalorder %s61, %s77
      %p79 = scmp.eq.s32.totalorder %s27, 0
      %p80 = por %p78, %p79
      %s82 = sadd.s32 %s81, 1
      %p85 = scmp.eq.s32.totalorder %s21, 1
      %p86 = scmp.ne.s32.totalorder %s81, %s83
      %p87 = scmp.eq.s32.totalorder %s21, 0
      %p88 = por %p86, %p87
      %p89 = scmp.ne.s32.totalorder %s81, %s83
      %p90 = scmp.eq.s32.totalorder %s26, 1
      %p91 = por %p89, %p90
      %p92 = scmp.ne.s32.totalorder %s83, %s84
      %p93 = scmp.eq.s32.totalorder %s26, 0
      %p94 = por %p92, %p93
      %p95 = scmp.ne.s32.totalorder %s83, %s84
      %p96 = scmp.eq.s32.totalorder %s27, 1
      %p97 = por %p95, %p96
      %p99 = scmp.ne.s32.totalorder %s84, %s98
      %p100 = scmp.eq.s32.totalorder %s27, 0
      %p101 = por %p99, %p100
      %s103 = sadd.s32 %s102, 1
      %p106 = scmp.eq.s32.totalorder %s21, 1
      %p107 = scmp.ne.s32.totalorder %s102, %s104
      %p108 = scmp.eq.s32.totalorder %s21, 0
      %p109 = por %p107, %p108
      %p110 = scmp.ne.s32.totalorder %s102, %s104
      %p111 = scmp.eq.s32.totalorder %s26, 1
      %p112 = por %p110, %p111
      %p113 = scmp.ne.s32.totalorder %s104, %s105
      %p114 = scmp.eq.s32.totalorder %s26, 0
      %p115 = por %p113, %p114
      %p116 = scmp.ne.s32.totalorder %s104, %s105
      %p117 = scmp.eq.s32.totalorder %s27, 1
      %p118 = por %p116, %p117
      %p120 = scmp.ne.s32.totalorder %s105, %s119
      %p121 = scmp.eq.s32.totalorder %s27, 0
      %p122 = por %p120, %p121
      %s124 = sadd.s32 %s123, 1
      %p127 = scmp.eq.s32.totalorder %s21, 1
      %p128 = scmp.ne.s32.totalorder %s123, %s125
      %p129 = scmp.eq.s32.totalorder %s21, 0
      %p130 = por %p128, %p129
      %p131 = scmp.ne.s32.totalorder %s123, %s125
      %p132 = scmp.eq.s32.totalorder %s26, 1
      %p133 = por %p131, %p132
      %p134 = scmp.ne.s32.totalorder %s125, %s126
      %p135 = scmp.eq.s32.totalorder %s26, 0
      %p136 = por %p134, %p135
      %p137 = scmp.ne.s32.totalorder %s125, %s126
      %p138 = scmp.eq.s32.totalorder %s27, 1
      %p139 = por %p137, %p138
      %p141 = scmp.ne.s32.totalorder %s126, %s140
      %p142 = scmp.eq.s32.totalorder %s27, 0
      %p143 = por %p141, %p142
      %s145 = sadd.s32 %s144, 1
      %p148 = scmp.eq.s32.totalorder %s21, 1
      %p149 = scmp.ne.s32.totalorder %s144, %s146
      %p150 = scmp.eq.s32.totalorder %s21, 0
      %p151 = por %p149, %p150
      %p152 = scmp.ne.s32.totalorder %s144, %s146
      %p153 = scmp.eq.s32.totalorder %s26, 1
      %p154 = por %p152, %p153
      %p155 = scmp.ne.s32.totalorder %s146, %s147
      %p156 = scmp.eq.s32.totalorder %s26, 0
      %p157 = por %p155, %p156
      %p158 = scmp.ne.s32.totalorder %s146, %s147
      %p159 = scmp.eq.s32.totalorder %s27, 1
      %p160 = por %p158, %p159
      %p162 = scmp.ne.s32.totalorder %s147, %s161
      %p163 = scmp.eq.s32.totalorder %s27, 0
      %p164 = por %p162, %p163
      %s165 = ssub.s32 %s21, %s28
      %p166 = scmp.eq.s32.totalorder %s165, 0
      %s168 = sadd.s32 %s167, 1
      %s169 = scalar_select %p166, %s167, %s168
      %p172 = pneg %p166
      %p173 = scmp.eq.s32.totalorder %s21, 1
      %p174 = por %p172, %p173
      %p175 = scmp.ne.s32.totalorder %s167, %s170
      %p176 = scmp.eq.s32.totalorder %s21, 0
      %p177 = por %p175, %p176
      %p178 = scmp.ne.s32.totalorder %s167, %s170
      %p179 = scmp.eq.s32.totalorder %s26, 1
      %p180 = por %p178, %p179
      %p181 = scmp.ne.s32.totalorder %s170, %s171
      %p182 = scmp.eq.s32.totalorder %s26, 0
      %p183 = por %p181, %p182
      %p184 = scmp.ne.s32.totalorder %s170, %s171
      %p185 = scmp.eq.s32.totalorder %s27, 1
      %p186 = por %p184, %p185
      %p188 = scmp.ne.s32.totalorder %s171, %s187
      %p189 = scmp.eq.s32.totalorder %s27, 0
      %p190 = por %p188, %p189
      %p191 = scmp.le.s32.totalorder 1, %s21
      %p192 = scmp.lt.s32.totalorder %s21, 3
      %p193 = pnand %p191, %p192
      %p194 = pneg %p193
      // Predicated region
      $region9: #{tpu_custom_call.1} parent=5 // pred_check
        _
      $region10: #{tpu_custom_call.1} parent=5 // pred_check_branch
        %196 = sbr.rel (%p193) target = $region12
      $region11: #{tpu_custom_call.1} parent=5 // pred_region
        %s197 = ssub.s32 %s21, 1
        // Predicated region
        $region13: #{tpu_custom_call.1} parent=11 // pred_check
          %p198 = pneg %p94
        $region14: #{tpu_custom_call.1} parent=11 // pred_check_branch
          %200 = sbr.rel (%p198) target = $region16
        $region15: #{tpu_custom_call.1} parent=11 // pred_region
          _
        $region16: #{tpu_custom_call.1} parent=11 // pred_fallthru
          _
        // Predicated region
        $region17: #{tpu_custom_call.1} parent=11 // pred_check
          %p201 = pneg %p115
        $region18: #{tpu_custom_call.1} parent=11 // pred_check_branch
          %203 = sbr.rel (%p201) target = $region20
        $region19: #{tpu_custom_call.1} parent=11 // pred_region
          _
        $region20: #{tpu_custom_call.1} parent=11 // pred_fallthru
          _
        // Predicated region
        $region21: #{tpu_custom_call.1} parent=11 // pred_check
          %p204 = pneg %p136
        $region22: #{tpu_custom_call.1} parent=11 // pred_check_branch
          %206 = sbr.rel (%p204) target = $region24
        $region23: #{tpu_custom_call.1} parent=11 // pred_region
          _
        $region24: #{tpu_custom_call.1} parent=11 // pred_fallthru
          _
        // Predicated region
        $region25: #{tpu_custom_call.1} parent=11 // pred_check
          %p207 = pneg %p157
        $region26: #{tpu_custom_call.1} parent=11 // pred_check_branch
          %209 = sbr.rel (%p207) target = $region28
        $region27: #{tpu_custom_call.1} parent=11 // pred_region
          _
        $region28: #{tpu_custom_call.1} parent=11 // pred_fallthru
          _
      $region12: #{tpu_custom_call.1} parent=5 // pred_fallthru
        _
      %p210 = scmp.lt.s32.totalorder %s21, 2
      // Predicated region
      $region29: #{tpu_custom_call.1} parent=5 // pred_check
        %p211 = pneg %p210
      $region30: #{tpu_custom_call.1} parent=5 // pred_check_branch
        %213 = sbr.rel (%p211) target = $region32
      $region31: #{tpu_custom_call.1} parent=5 // pred_region
        // Predicated region
        $region33: #{tpu_custom_call.1} parent=31 // pred_check
          %p214 = pneg %p41
        $region34: #{tpu_custom_call.1} parent=31 // pred_check_branch
          %216 = sbr.rel (%p214) target = $region36
        $region35: #{tpu_custom_call.1} parent=31 // pred_region
          %s217 = sand.u32 %s31, 1
          %s218 = scalar_lea.sflag [#allocation3], %s217
          %s219 = sand.u32 %s31, 1
          %s220 = smul.addr %s219, 144
          %s221 = scalar_lea.vmem [#allocation2], %s220
          %s223 = ssub.s32 2304, 2304
          %224 = vsyncadd %s218, %s223
          %s225 = smul.addr %s21, 36
          %s226 = smul.addr %s225, 64
          %s227 = scalar_lea.hbm %s0, %s226
          %s228 = sshll.u32 %s221, 4
          %s229 = int_to_ptr.vmem [resolvable:$true] %s228
          %234 = dma.hbm_to_vmem [thread:$0]  %s227, 2304, %s229, %s218, 128, 128, 8
        $region36: #{tpu_custom_call.1} parent=31 // pred_fallthru
          _
        // Predicated region
        $region37: #{tpu_custom_call.1} parent=31 // pred_check
          %p235 = pneg %p67
        $region38: #{tpu_custom_call.1} parent=31 // pred_check_branch
          %237 = sbr.rel (%p235) target = $region40
        $region39: #{tpu_custom_call.1} parent=31 // pred_region
          %s238 = sand.u32 %s57, 1
          %s239 = scalar_lea.sflag [#allocation6], %s238
          %s240 = sand.u32 %s57, 1
          %s241 = smul.addr %s240, 32
          %s242 = scalar_lea.vmem [#allocation5], %s241
          %s244 = ssub.s32 512, 512
          %245 = vsyncadd %s239, %s244
          %s246 = smul.addr %s21, 4
          %s247 = smul.addr %s246, 128
          %s248 = scalar_lea.hbm %s1, %s247
          %s249 = sshll.u32 %s242, 4
          %s250 = int_to_ptr.vmem [resolvable:$true] %s249
          %255 = dma.hbm_to_vmem [thread:$0]  %s248, 512, %s250, %s239, 256, 256, 16
        $region40: #{tpu_custom_call.1} parent=31 // pred_fallthru
          _
      $region32: #{tpu_custom_call.1} parent=5 // pred_fallthru
        _
      %p256 = scmp.le.s32.totalorder 1, %s21
      %p257 = scmp.lt.s32.totalorder %s21, 3
      %p258 = pnand %p256, %p257
      %p259 = pneg %p258
      // Predicated region
      $region41: #{tpu_custom_call.1} parent=5 // pred_check
        _
      $region42: #{tpu_custom_call.1} parent=5 // pred_check_branch
        %261 = sbr.rel (%p258) target = $region44
      $region43: #{tpu_custom_call.1} parent=5 // pred_region
        %s262 = ssub.s32 %s21, 1
        %s263 = sand.u32 %s34, 1
        %s264 = scalar_lea.sflag [#allocation3], %s263
        %s265 = sand.u32 %s34, 1
        %s266 = smul.addr %s265, 144
        %s267 = scalar_lea.vmem [#allocation2], %s266
        // Predicated region
        $region45: #{tpu_custom_call.1} parent=43 // pred_check
          %p268 = pneg %p47
        $region46: #{tpu_custom_call.1} parent=43 // pred_check_branch
          %270 = sbr.rel (%p268) target = $region48
        $region47: #{tpu_custom_call.1} parent=43 // pred_region
          %271 = dma.done %s264, 2304
        $region48: #{tpu_custom_call.1} parent=43 // pred_fallthru
          _
        %s272 = sand.u32 %s60, 1
        %s273 = scalar_lea.sflag [#allocation6], %s272
        %s274 = sand.u32 %s60, 1
        %s275 = smul.addr %s274, 32
        %s276 = scalar_lea.vmem [#allocation5], %s275
        // Predicated region
        $region49: #{tpu_custom_call.1} parent=43 // pred_check
          %p277 = pneg %p73
        $region50: #{tpu_custom_call.1} parent=43 // pred_check_branch
          %279 = sbr.rel (%p277) target = $region52
        $region51: #{tpu_custom_call.1} parent=43 // pred_region
          %280 = dma.done %s273, 512
        $region52: #{tpu_custom_call.1} parent=43 // pred_fallthru
          _
        %s281 = sand.u32 %s34, 1
        %s282 = scalar_lea.sflag [#allocation3], %s281
        %s283 = sand.u32 %s34, 1
        %s284 = smul.addr %s283, 144
        %s285 = scalar_lea.vmem [#allocation2], %s284
        %p286 = pneg %p47
        %p287 = pneg %p44
        %s288 = sand.u32 %s60, 1
        %s289 = scalar_lea.sflag [#allocation6], %s288
        %s290 = sand.u32 %s60, 1
        %s291 = smul.addr %s290, 32
        %s292 = scalar_lea.vmem [#allocation5], %s291
        %p293 = pneg %p73
        %p294 = pneg %p70
        %p295 = pneg %p94
        %p296 = pneg %p91
        %p297 = pneg %p115
        %p298 = pneg %p112
        %p299 = pneg %p136
        %p300 = pneg %p133
        %p301 = pneg %p157
        %p302 = pneg %p154
        %p303 = pneg %p183
        %p304 = pneg %p180
        %s305 = sand.u32 %s170, 1
        %s306 = scalar_lea.sflag [#allocation4], %s305
        %s307 = sand.u32 %s170, 1
        %s308 = smul.addr %s307, 32
        %s309 = scalar_lea.vmem [#allocation7], %s308
        %v313 = vlaneseq
        %v314 = vand.u32 %v313, 127
        %v315 = vadd.s32 %v314, 128
        %vm316 = vcmp.lt.s32.totalorder %v314, 0
        %v317 = vsub.s32 0, %v314
        %v318 = vsel %vm316, %v317, %v314
        %v319 = vshrl.u32 %v318, 4
        %v320 = vand.u32 %v318, 15
        %v321 = vsub.s32 0, %v320
        %v322 = vsel %vm316, %v321, %v320
        %vm323 = vcmp.lt.s32.totalorder %v315, 0
        %v324 = vsub.s32 0, %v315
        %v325 = vsel %vm323, %v324, %v315
        %v326 = vshrl.u32 %v325, 4
        %v327 = vand.u32 %v325, 15
        %v328 = vsub.s32 0, %v327
        %v329 = vsel %vm323, %v328, %v327
        %vm330 = vcmp.ne.s32.totalorder %v322, 0
        %vm331 = vcmp.ne.s32.totalorder %v329, 0
        %vm332 = vcmp.lt.s32.totalorder %v322, 0
        %vm333 = vcmp.lt.s32.totalorder %v329, 0
        %vm334 = vmand %vm332, %vm330
        %vm335 = vmand %vm333, %vm331
        %v336 = vadd.s32 %v322, 16
        %v337 = vadd.s32 %v329, 16
        %v338 = vsel %vm334, %v336, %v322
        %v339 = vsel %vm335, %v337, %v329
        %vm340 = vcmp.ne.s32.totalorder %v338, 0
        %vm341 = vcmp.ne.s32.totalorder %v339, 0
        %vm342 = vcmp.ne.s32.totalorder %v338, 15
        %vm343 = vcmp.ne.s32.totalorder %v339, 15
        %v344 = vld [vmem:[%s276] sm:$0xff]
        %v345 = vld [vmem:[%s276 + $0x8] sm:$0xff]
        %v346 = vld [vmem:[%s276 + $0x10] sm:$0xff]
        %v347 = vld [vmem:[%s276 + $0x18] sm:$0xff]
        %v348 = vld [vmem:[%s2] sm:$0xff]
        %v349 = vld [vmem:[%s2 + $0x8] sm:$0xff]
        %v350 = vld [vmem:[%s267] sm:$0xff]
        %v351 = vld [vmem:[%s267 + $0x8] sm:$0xff]
        %v352 = vld [vmem:[%s267 + $0x10] sm:$0xff]
        %v353 = vld [vmem:[%s267 + $0x18] sm:$0xff]
        %v354 = vld [vmem:[%s267 + $0x20] sm:$0xff]
        %v355 = vld [vmem:[%s267 + $0x28] sm:$0xff]
        %v356 = vld [vmem:[%s267 + $0x30] sm:$0xff]
        %v357 = vld [vmem:[%s267 + $0x38] sm:$0xff]
        %v358 = vld [vmem:[%s267 + $0x40] sm:$0xff]
        %v359 = vld [vmem:[%s267 + $0x48] sm:$0xff]
        %v360 = vld [vmem:[%s267 + $0x50] sm:$0xff]
        %v361 = vld [vmem:[%s267 + $0x58] sm:$0xff]
        %v362 = vld [vmem:[%s267 + $0x60] sm:$0xff]
        %v363 = vld [vmem:[%s267 + $0x68] sm:$0xff]
        %v364 = vld [vmem:[%s267 + $0x70] sm:$0xff]
        %v365 = vld [vmem:[%s267 + $0x78] sm:$0xff]
        %v366 = vld [vmem:[%s267 + $0x80] sm:$0xff]
        %v367 = vld [vmem:[%s267 + $0x88] sm:$0xff]
        %v368 = vld [vmem:[%s3] sm:$0xff]
        %v369 = vld [vmem:[%s3 + $0x8] sm:$0xff]
        %371 = vset.pattern.permute.xlu0 0
        %372 = vperm.xlu0 %371, %v368
        %v373 = vpop.permute.xlu0 %372
        %376 = vset.pattern.permute.xlu0 0
        %377 = vperm.xlu0 %376, %v369
        %v378 = vpop.permute.xlu0 %377
        %v382 = vunpack.c.l.b16 %v348
        %v383 = vunpack.c.h.b16 %v348
        %v384 = vunpack.c.l.b16 %v349
        %v385 = vunpack.c.h.b16 %v349
        %v386 = vpack.c.b16 %v384, %v382
        %v387 = vpack.c.b16 %v385, %v383
        %v407 = vunpack.c.l.b16 %v350
        %v408 = vunpack.c.h.b16 %v350
        %v409 = vunpack.c.l.b16 %v351
        %v410 = vunpack.c.h.b16 %v351
        %v411 = vunpack.c.l.b16 %v352
        %v412 = vunpack.c.h.b16 %v352
        %v413 = vunpack.c.l.b16 %v353
        %v414 = vunpack.c.h.b16 %v353
        %v415 = vunpack.c.l.b16 %v354
        %v416 = vunpack.c.h.b16 %v354
        %v417 = vunpack.c.l.b16 %v355
        %v418 = vunpack.c.h.b16 %v355
        %v419 = vunpack.c.l.b16 %v356
        %v420 = vunpack.c.h.b16 %v356
        %v421 = vunpack.c.l.b16 %v357
        %v422 = vunpack.c.h.b16 %v357
        %v423 = vunpack.c.l.b16 %v358
        %v424 = vunpack.c.h.b16 %v358
        %v425 = vunpack.c.l.b16 %v359
        %v426 = vunpack.c.h.b16 %v359
        %v427 = vunpack.c.l.b16 %v360
        %v428 = vunpack.c.h.b16 %v360
        %v429 = vunpack.c.l.b16 %v361
        %v430 = vunpack.c.h.b16 %v361
        %v431 = vunpack.c.l.b16 %v362
        %v432 = vunpack.c.h.b16 %v362
        %v433 = vunpack.c.l.b16 %v363
        %v434 = vunpack.c.h.b16 %v363
        %v435 = vunpack.c.l.b16 %v364
        %v436 = vunpack.c.h.b16 %v364
        %v437 = vunpack.c.l.b16 %v365
        %v438 = vunpack.c.h.b16 %v365
        %v439 = vunpack.c.l.b16 %v366
        %v440 = vunpack.c.h.b16 %v366
        %v441 = vunpack.c.l.b16 %v367
        %v442 = vunpack.c.h.b16 %v367
        %v443 = vpack.c.b16 %v409, %v407
        %v444 = vpack.c.b16 %v410, %v408
        %v445 = vpack.c.b16 %v413, %v411
        %v446 = vpack.c.b16 %v414, %v412
        %v447 = vpack.c.b16 %v417, %v415
        %v448 = vpack.c.b16 %v418, %v416
        %v449 = vpack.c.b16 %v421, %v419
        %v450 = vpack.c.b16 %v422, %v420
        %v451 = vpack.c.b16 %v425, %v423
        %v452 = vpack.c.b16 %v426, %v424
        %v453 = vpack.c.b16 %v429, %v427
        %v454 = vpack.c.b16 %v430, %v428
        %v455 = vpack.c.b16 %v433, %v431
        %v456 = vpack.c.b16 %v434, %v432
        %v457 = vpack.c.b16 %v437, %v435
        %v458 = vpack.c.b16 %v438, %v436
        %v459 = vpack.c.b16 %v441, %v439
        %v460 = vpack.c.b16 %v442, %v440
        %vm479 = vcmask 130048
        %v481 = vsel %vm479, %v387, 0
        %483 = vmatprep.subr.bf16.mxu0 %v444
        %484 = vmatpush1.bf16.msra.mxu0 %v443
        %485 = vmatprep.subr.bf16.mxu0 %v446
        %486 = vmatpush1.bf16.msra.mxu0 %v445
        %487 = vmatprep.subr.bf16.mxu0 %v448
        %488 = vmatpush1.bf16.msra.mxu0 %v447
        %489 = vmatprep.subr.bf16.mxu0 %v450
        %490 = vmatpush1.bf16.msra.mxu0 %v449
        %491 = vmatprep.subr.bf16.mxu0 %v452
        %492 = vmatpush1.bf16.msra.mxu0 %v451
        %493 = vmatprep.subr.bf16.mxu0 %v454
        %494 = vmatpush1.bf16.msra.mxu0 %v453
        %495 = vmatprep.subr.bf16.mxu0 %v456
        %496 = vmatpush1.bf16.msra.mxu0 %v455
        %497 = vmatprep.subr.bf16.mxu0 %v458
        %498 = vmatpush1.bf16.msra.mxu0 %v457
        %499 = vmatprep.subr.bf16.mxu0 %v460
        %500 = vmatpush1.bf16.msra.mxu0 %v459
        %501 = vmatprep.subr.bf16.mxu0 0
        %502 = vmatpush1.bf16.msra.mxu0 0
        %503 = vmatprep.subr.bf16.mxu0 0
        %504 = vmatpush1.bf16.msra.mxu0 0
        %505 = vmatprep.subr.bf16.mxu0 0
        %506 = vmatpush1.bf16.msra.mxu0 0
        %507 = vmatprep.subr.bf16.mxu0 0
        %508 = vmatpush1.bf16.msra.mxu0 0
        %509 = vmatprep.subr.bf16.mxu0 0
        %510 = vmatpush1.bf16.msra.mxu0 0
        %511 = vmatprep.subr.bf16.mxu0 0
        %512 = vmatpush1.bf16.msra.mxu0 0
        %513 = vmatprep.subr.bf16.mxu0 0
        %514 = vmatpush1.bf16.msra.mxu0 0
        %515 = vmatprep.mubr.bf16.mxu0 %v481
        %516 = vmatmul.mubr.bf16.gmra.mrb[0].mxu0 %v386
        %v517 = vpop.f32.mrb[0].mxu0
        %v518 = vadd.f32 %v373, %v517
        %v519 = vpop.f32.mrb[0].mxu0
        %v520 = vadd.f32 %v373, %v519
        %v521 = vpop.f32.mrb[0].mxu0
        %v522 = vadd.f32 %v378, %v521
        %v523 = vpop.f32.mrb[0].mxu0
        %v524 = vadd.f32 %v378, %v523
        %525 = vdwg.mxu0
        %v526 = vmax.f32 %v518, 0.0
        %v527 = vmax.f32 %v520, 0.0
        %v528 = vmax.f32 %v522, 0.0
        %v529 = vmax.f32 %v524, 0.0
        %v530 = vmin.f32 %v526, 20.0
        %v531 = vmin.f32 %v527, 20.0
        %v532 = vmin.f32 %v528, 20.0
        %v533 = vmin.f32 %v529, 20.0
        %v534 = vpack.c.bf16 %v530, %v530
        %v535 = vpack.c.bf16 %v531, %v531
        %v536 = vld [vmem:[%s4] sm:$0x3]
        %v537 = vld [vmem:[%s5] sm:$0xf]
        %540 = vrot.lane.b32.xlu0 %v534, 17
        %v541 = vpop.permute.xlu0 %540
        %542 = vrot.lane.b32.xlu0 %v535, 17
        %v543 = vpop.permute.xlu0 %542
        %vm544 = vcmask 138240
        %v545 = vsel %vm544, %v541, %v543
        %vm547 = vcmask 138240
        %v550 = vsel %vm547, 0, %v541
        %v553 = vsel %vm547, %v543, 0
        %v555 = vsel %vm340, 1, 0
        %v556 = vsel %vm341, 1, 0
        %vm557 = vcmp.eq.s32.totalorder %v555, 1
        %vm558 = vcmp.eq.s32.totalorder %v556, 1
        %vm559 = vmpackc.low %vm558, %vm557
        %v560 = vsel %vm559, 65537, 0
        %v561 = vlaneseq
        %v562 = vshrl.u32 %v561, 7
        %v563 = vsub.s32 0, %v562
        %v564 = vrot.slane %v560, %v563
        %v565 = vlaneseq
        %v566 = vshrl.u32 %v565, 7
        %v567 = vsub.s32 4, %v566
        %v568 = vrot.slane %v560, %v567
        %vm569 = vcmp.ne.s16.totalorder %v564, 0
        %vm570 = vcmp.ne.s16.totalorder %v568, 0
        %v571 = vsel %vm569, %v550, 0
        %v572 = vsel %vm570, %v545, 0
        %v573 = vsel %vm342, 1, 0
        %v574 = vsel %vm343, 1, 0
        %vm575 = vcmp.eq.s32.totalorder %v573, 1
        %vm576 = vcmp.eq.s32.totalorder %v574, 1
        %vm577 = vmpackc.low %vm576, %vm575
        %v578 = vsel %vm577, 65537, 0
        %v579 = vlaneseq
        %v580 = vshrl.u32 %v579, 7
        %v581 = vsub.s32 0, %v580
        %v582 = vrot.slane %v578, %v581
        %v583 = vlaneseq
        %v584 = vshrl.u32 %v583, 7
        %v585 = vsub.s32 4, %v584
        %v586 = vrot.slane %v578, %v585
        %587 = vrot.lane.b32.xlu0 %v582, 2
        %v588 = vpop.permute.xlu0 %587
        %589 = vrot.lane.b32.xlu0 %v586, 2
        %v590 = vpop.permute.xlu0 %589
        %vm591 = vcmask 15360
        %v592 = vsel %vm591, %v588, %v590
        %vm593 = vcmp.ne.s16.totalorder %v588, 0
        %vm594 = vcmp.ne.s16.totalorder %v592, 0
        %vm595 = vcmp.ne.s16.totalorder %v590, 0
        %v596 = vsel %vm593, %v550, 0
        %v597 = vsel %vm594, %v545, 0
        %v598 = vsel %vm595, %v553, 0
        %599 = vrot.lane.b32.xlu0 %v564, 16
        %v600 = vpop.permute.xlu0 %599
        %601 = vrot.lane.b32.xlu0 %v568, 16
        %v602 = vpop.permute.xlu0 %601
        %vm603 = vcmask 130048
        %v604 = vsel %vm603, %v600, %v602
        %vm605 = vcmp.ne.s16.totalorder %v600, 0
        %vm606 = vcmp.ne.s16.totalorder %v604, 0
        %vm607 = vcmp.ne.s16.totalorder %v602, 0
        %v608 = vsel %vm605, %v550, 0
        %v609 = vsel %vm606, %v545, 0
        %v610 = vsel %vm607, %v553, 0
        %611 = vrot.lane.b32.xlu0 %v582, 18
        %v612 = vpop.permute.xlu0 %611
        %613 = vrot.lane.b32.xlu0 %v586, 18
        %v614 = vpop.permute.xlu0 %613
        %vm615 = vcmask 146432
        %v616 = vsel %vm615, %v612, %v614
        %vm617 = vcmp.ne.s16.totalorder %v612, 0
        %vm618 = vcmp.ne.s16.totalorder %v616, 0
        %vm619 = vcmp.ne.s16.totalorder %v614, 0
        %v620 = vsel %vm617, %v550, 0
        %v621 = vsel %vm618, %v545, 0
        %v622 = vsel %vm619, %v553, 0
        %623 = vrot.lane.b32.xlu0 %v564, 32
        %v624 = vpop.permute.xlu0 %623
        %625 = vrot.lane.b32.xlu0 %v568, 32
        %v626 = vpop.permute.xlu0 %625
        %vm627 = vcmask 261120
        %v628 = vsel %vm627, %v624, %v626
        %vm629 = vcmp.ne.s16.totalorder %v624, 0
        %vm630 = vcmp.ne.s16.totalorder %v628, 0
        %vm631 = vcmp.ne.s16.totalorder %v626, 0
        %v632 = vsel %vm629, %v550, 0
        %v633 = vsel %vm630, %v545, 0
        %v634 = vsel %vm631, %v553, 0
        %635 = vrot.lane.b32.xlu0 %v582, 34
        %v636 = vpop.permute.xlu0 %635
        %637 = vrot.lane.b32.xlu0 %v586, 34
        %v638 = vpop.permute.xlu0 %637
        %vm639 = vcmask 277504
        %v640 = vsel %vm639, %v636, %v638
        %vm641 = vcmp.ne.s16.totalorder %v636, 0
        %vm642 = vcmp.ne.s16.totalorder %v640, 0
        %vm643 = vcmp.ne.s16.totalorder %v638, 0
        %v644 = vsel %vm641, %v550, 0
        %v645 = vsel %vm642, %v545, 0
        %v646 = vsel %vm643, %v553, 0
        %v649 = vrot.slane %v550, 6
        %v650 = vrot.slane %v545, 6
        %v651 = vrot.slane %v553, 6
        %652 = vrot.lane.b32.xlu0 %v649, 127
        %v653 = vpop.permute.xlu0 %652
        %654 = vrot.lane.b32.xlu0 %v650, 127
        %v655 = vpop.permute.xlu0 %654
        %656 = vrot.lane.b32.xlu0 %v651, 127
        %v657 = vpop.permute.xlu0 %656
        %vm658 = vcmask 1039360
        %v659 = vsel %vm658, %v653, %v655
        %v660 = vsel %vm658, %v655, %v657
        %v664 = vrot.slane %v596, 4
        %v665 = vrot.slane %v597, 4
        %v666 = vrot.slane %v598, 4
        %667 = vrot.lane.b32.xlu0 %v664, 126
        %v668 = vpop.permute.xlu0 %667
        %669 = vrot.lane.b32.xlu0 %v665, 126
        %v670 = vpop.permute.xlu0 %669
        %671 = vrot.lane.b32.xlu0 %v666, 126
        %v672 = vpop.permute.xlu0 %671
        %vm673 = vcmask 1031168
        %v674 = vsel %vm673, %v668, %v670
        %v675 = vsel %vm673, %v670, %v672
        %v679 = vrot.slane %v608, 2
        %v680 = vrot.slane %v609, 2
        %v681 = vrot.slane %v610, 2
        %682 = vrot.lane.b32.xlu0 %v679, 112
        %v683 = vpop.permute.xlu0 %682
        %684 = vrot.lane.b32.xlu0 %v680, 112
        %v685 = vpop.permute.xlu0 %684
        %686 = vrot.lane.b32.xlu0 %v681, 112
        %v687 = vpop.permute.xlu0 %686
        %vm688 = vcmask 916480
        %v689 = vsel %vm688, %v683, %v685
        %v690 = vsel %vm688, %v685, %v687
        %691 = vrot.lane.b32.xlu0 %v550, 111
        %v692 = vpop.permute.xlu0 %691
        %693 = vrot.lane.b32.xlu0 %v545, 111
        %v694 = vpop.permute.xlu0 %693
        %695 = vrot.lane.b32.xlu0 %v553, 111
        %v696 = vpop.permute.xlu0 %695
        %vm697 = vcmask 908288
        %v698 = vsel %vm697, %v692, %v694
        %v699 = vsel %vm697, %v694, %v696
        %v703 = vrot.slane %v620, 6
        %v704 = vrot.slane %v621, 6
        %v705 = vrot.slane %v622, 6
        %706 = vrot.lane.b32.xlu0 %v703, 110
        %v707 = vpop.permute.xlu0 %706
        %708 = vrot.lane.b32.xlu0 %v704, 110
        %v709 = vpop.permute.xlu0 %708
        %710 = vrot.lane.b32.xlu0 %v705, 110
        %v711 = vpop.permute.xlu0 %710
        %vm712 = vcmask 900096
        %v713 = vsel %vm712, %v707, %v709
        %v714 = vsel %vm712, %v709, %v711
        %v718 = vrot.slane %v632, 4
        %v719 = vrot.slane %v633, 4
        %v720 = vrot.slane %v634, 4
        %721 = vrot.lane.b32.xlu0 %v718, 96
        %v722 = vpop.permute.xlu0 %721
        %723 = vrot.lane.b32.xlu0 %v719, 96
        %v724 = vpop.permute.xlu0 %723
        %725 = vrot.lane.b32.xlu0 %v720, 96
        %v726 = vpop.permute.xlu0 %725
        %vm727 = vcmask 785408
        %v728 = vsel %vm727, %v722, %v724
        %v729 = vsel %vm727, %v724, %v726
        %v730 = vrot.slane %v550, 2
        %v731 = vrot.slane %v545, 2
        %v732 = vrot.slane %v553, 2
        %733 = vrot.lane.b32.xlu0 %v730, 95
        %v734 = vpop.permute.xlu0 %733
        %735 = vrot.lane.b32.xlu0 %v731, 95
        %v736 = vpop.permute.xlu0 %735
        %737 = vrot.lane.b32.xlu0 %v732, 95
        %v738 = vpop.permute.xlu0 %737
        %vm739 = vcmask 777216
        %v740 = vsel %vm739, %v734, %v736
        %v741 = vsel %vm739, %v736, %v738
        %745 = vrot.lane.b32.xlu0 %v644, 94
        %v746 = vpop.permute.xlu0 %745
        %747 = vrot.lane.b32.xlu0 %v645, 94
        %v748 = vpop.permute.xlu0 %747
        %749 = vrot.lane.b32.xlu0 %v646, 94
        %v750 = vpop.permute.xlu0 %749
        %vm751 = vcmask 769024
        %v752 = vsel %vm751, %v746, %v748
        %v753 = vsel %vm751, %v748, %v750
        %vm754 = vcmask 1041408
        %v757 = vsel %vm754, %v571, %v659
        %v760 = vsel %vm754, %v572, %v660
        %vm761 = vcmask 1043456
        %v763 = vsel %vm761, %v757, %v674
        %v765 = vsel %vm761, %v760, %v675
        %vm766 = vcmask 1045504
        %v768 = vsel %vm766, %v763, %v689
        %v771 = vsel %vm766, %v765, %v690
        %v775 = vsel %vm754, %v698, %v713
        %v778 = vsel %vm754, %v699, %v714
        %v780 = vsel %vm761, %v775, %v728
        %v782 = vsel %vm761, %v778, %v729
        %v784 = vsel %vm766, %v780, %v740
        %v787 = vsel %vm766, %v782, %v741
        %790 = vset.pattern.permute.xlu0 0
        %791 = vperm.xlu0 %790, %v537
        %v792 = vpop.permute.xlu0 %791
        %vm794 = vcmask 293888
        %v796 = vsel %vm794, %v536, 0
        %v799 = vsel %vm754, %v752, 0
        %v802 = vsel %vm754, %v753, 0
        %804 = vmatprep.subr.bf16.mxu0 %v771
        %805 = vmatpush1.bf16.msra.mxu0 %v768
        %806 = vmatprep.subr.bf16.mxu0 %v787
        %807 = vmatpush1.bf16.msra.mxu0 %v784
        %808 = vmatprep.subr.bf16.mxu0 %v802
        %809 = vmatpush1.bf16.msra.mxu0 %v799
        %810 = vmatprep.subr.bf16.mxu0 0
        %811 = vmatpush1.bf16.msra.mxu0 0
        %812 = vmatprep.subr.bf16.mxu0 0
        %813 = vmatpush1.bf16.msra.mxu0 0
        %814 = vmatprep.subr.bf16.mxu0 0
        %815 = vmatpush1.bf16.msra.mxu0 0
        %816 = vmatprep.subr.bf16.mxu0 0
        %817 = vmatpush1.bf16.msra.mxu0 0
        %818 = vmatprep.subr.bf16.mxu0 0
        %819 = vmatpush1.bf16.msra.mxu0 0
        %820 = vmatprep.subr.bf16.mxu0 0
        %821 = vmatpush1.bf16.msra.mxu0 0
        %822 = vmatprep.subr.bf16.mxu0 0
        %823 = vmatpush1.bf16.msra.mxu0 0
        %824 = vmatprep.subr.bf16.mxu0 0
        %825 = vmatpush1.bf16.msra.mxu0 0
        %826 = vmatprep.subr.bf16.mxu0 0
        %827 = vmatpush1.bf16.msra.mxu0 0
        %828 = vmatprep.subr.bf16.mxu0 0
        %829 = vmatpush1.bf16.msra.mxu0 0
        %830 = vmatprep.subr.bf16.mxu0 0
        %831 = vmatpush1.bf16.msra.mxu0 0
        %832 = vmatprep.subr.bf16.mxu0 0
        %833 = vmatpush1.bf16.msra.mxu0 0
        %834 = vmatprep.subr.bf16.mxu0 0
        %835 = vmatpush1.bf16.msra.mxu0 0
        %836 = vmatprep.mubr.bf16.mxu0 0
        %837 = vmatmul.mubr.bf16.gmra.mrb[0].mxu0 %v796
        %v838 = vpop.f32.mrb[0].mxu0
        %v839 = vadd.f32 %v792, %v838
        %v840 = vpop.f32.mrb[0].mxu0
        %v841 = vadd.f32 %v792, %v840
        %v842 = vpop.f32.mrb[0].mxu0
        %v843 = vpop.f32.mrb[0].mxu0
        %844 = vdwg.mxu0
        %v845 = vmax.f32 %v839, 0.0
        %v846 = vmax.f32 %v841, 0.0
        %v847 = vmin.f32 %v845, 20.0
        %v848 = vmin.f32 %v846, 20.0
        %v849 = vadd.f32 %v847, %v344
        %v850 = vadd.f32 %v848, %v345
        %v851 = vmax.f32 %v849, 0.0
        %v852 = vmax.f32 %v850, 0.0
        %v853 = vmin.f32 %v851, 20.0
        %v854 = vmin.f32 %v852, 20.0
        %v857 = vrot.slane %v530, 4
        %v858 = vrot.slane %v531, 4
        %v861 = vadd.f32 %v847, %v857
        %v862 = vadd.f32 %v848, %v858
        %v863 = vpack.c.bf16 %v861, %v861
        %v864 = vpack.c.bf16 %v862, %v862
        %s865 = scalar_lea.vmem %s4, 2
        %v866 = vld [vmem:[%s865] sm:$0x3]
        %s867 = scalar_lea.vmem %s5, 4
        %v868 = vld [vmem:[%s867] sm:$0xf]
        %871 = vrot.lane.b32.xlu0 %v863, 17
        %v872 = vpop.permute.xlu0 %871
        %873 = vrot.lane.b32.xlu0 %v864, 17
        %v874 = vpop.permute.xlu0 %873
        %v875 = vsel %vm544, %v872, %v874
        %v878 = vsel %vm547, 0, %v872
        %v881 = vsel %vm547, %v874, 0
        %v883 = vsel %vm569, %v878, 0
        %v884 = vsel %vm570, %v875, 0
        %v885 = vsel %vm593, %v878, 0
        %v886 = vsel %vm594, %v875, 0
        %v887 = vsel %vm595, %v881, 0
        %v888 = vsel %vm605, %v878, 0
        %v889 = vsel %vm606, %v875, 0
        %v890 = vsel %vm607, %v881, 0
        %v891 = vsel %vm617, %v878, 0
        %v892 = vsel %vm618, %v875, 0
        %v893 = vsel %vm619, %v881, 0
        %v894 = vsel %vm629, %v878, 0
        %v895 = vsel %vm630, %v875, 0
        %v896 = vsel %vm631, %v881, 0
        %v897 = vsel %vm641, %v878, 0
        %v898 = vsel %vm642, %v875, 0
        %v899 = vsel %vm643, %v881, 0
        %v902 = vrot.slane %v878, 6
        %v903 = vrot.slane %v875, 6
        %v904 = vrot.slane %v881, 6
        %905 = vrot.lane.b32.xlu0 %v902, 127
        %v906 = vpop.permute.xlu0 %905
        %907 = vrot.lane.b32.xlu0 %v903, 127
        %v908 = vpop.permute.xlu0 %907
        %909 = vrot.lane.b32.xlu0 %v904, 127
        %v910 = vpop.permute.xlu0 %909
        %v911 = vsel %vm658, %v906, %v908
        %v912 = vsel %vm658, %v908, %v910
        %v916 = vrot.slane %v885, 4
        %v917 = vrot.slane %v886, 4
        %v918 = vrot.slane %v887, 4
        %919 = vrot.lane.b32.xlu0 %v916, 126
        %v920 = vpop.permute.xlu0 %919
        %921 = vrot.lane.b32.xlu0 %v917, 126
        %v922 = vpop.permute.xlu0 %921
        %923 = vrot.lane.b32.xlu0 %v918, 126
        %v924 = vpop.permute.xlu0 %923
        %v925 = vsel %vm673, %v920, %v922
        %v926 = vsel %vm673, %v922, %v924
        %v930 = vrot.slane %v888, 2
        %v931 = vrot.slane %v889, 2
        %v932 = vrot.slane %v890, 2
        %933 = vrot.lane.b32.xlu0 %v930, 112
        %v934 = vpop.permute.xlu0 %933
        %935 = vrot.lane.b32.xlu0 %v931, 112
        %v936 = vpop.permute.xlu0 %935
        %937 = vrot.lane.b32.xlu0 %v932, 112
        %v938 = vpop.permute.xlu0 %937
        %v939 = vsel %vm688, %v934, %v936
        %v940 = vsel %vm688, %v936, %v938
        %941 = vrot.lane.b32.xlu0 %v878, 111
        %v942 = vpop.permute.xlu0 %941
        %943 = vrot.lane.b32.xlu0 %v875, 111
        %v944 = vpop.permute.xlu0 %943
        %945 = vrot.lane.b32.xlu0 %v881, 111
        %v946 = vpop.permute.xlu0 %945
        %v947 = vsel %vm697, %v942, %v944
        %v948 = vsel %vm697, %v944, %v946
        %v952 = vrot.slane %v891, 6
        %v953 = vrot.slane %v892, 6
        %v954 = vrot.slane %v893, 6
        %955 = vrot.lane.b32.xlu0 %v952, 110
        %v956 = vpop.permute.xlu0 %955
        %957 = vrot.lane.b32.xlu0 %v953, 110
        %v958 = vpop.permute.xlu0 %957
        %959 = vrot.lane.b32.xlu0 %v954, 110
        %v960 = vpop.permute.xlu0 %959
        %v961 = vsel %vm712, %v956, %v958
        %v962 = vsel %vm712, %v958, %v960
        %v966 = vrot.slane %v894, 4
        %v967 = vrot.slane %v895, 4
        %v968 = vrot.slane %v896, 4
        %969 = vrot.lane.b32.xlu0 %v966, 96
        %v970 = vpop.permute.xlu0 %969
        %971 = vrot.lane.b32.xlu0 %v967, 96
        %v972 = vpop.permute.xlu0 %971
        %973 = vrot.lane.b32.xlu0 %v968, 96
        %v974 = vpop.permute.xlu0 %973
        %v975 = vsel %vm727, %v970, %v972
        %v976 = vsel %vm727, %v972, %v974
        %v977 = vrot.slane %v878, 2
        %v978 = vrot.slane %v875, 2
        %v979 = vrot.slane %v881, 2
        %980 = vrot.lane.b32.xlu0 %v977, 95
        %v981 = vpop.permute.xlu0 %980
        %982 = vrot.lane.b32.xlu0 %v978, 95
        %v983 = vpop.permute.xlu0 %982
        %984 = vrot.lane.b32.xlu0 %v979, 95
        %v985 = vpop.permute.xlu0 %984
        %v986 = vsel %vm739, %v981, %v983
        %v987 = vsel %vm739, %v983, %v985
        %991 = vrot.lane.b32.xlu0 %v897, 94
        %v992 = vpop.permute.xlu0 %991
        %993 = vrot.lane.b32.xlu0 %v898, 94
        %v994 = vpop.permute.xlu0 %993
        %995 = vrot.lane.b32.xlu0 %v899, 94
        %v996 = vpop.permute.xlu0 %995
        %v997 = vsel %vm751, %v992, %v994
        %v998 = vsel %vm751, %v994, %v996
        %v1001 = vsel %vm754, %v883, %v911
        %v1004 = vsel %vm754, %v884, %v912
        %v1006 = vsel %vm761, %v1001, %v925
        %v1008 = vsel %vm761, %v1004, %v926
        %v1010 = vsel %vm766, %v1006, %v939
        %v1013 = vsel %vm766, %v1008, %v940
        %v1017 = vsel %vm754, %v947, %v961
        %v1020 = vsel %vm754, %v948, %v962
        %v1022 = vsel %vm761, %v1017, %v975
        %v1024 = vsel %vm761, %v1020, %v976
        %v1026 = vsel %vm766, %v1022, %v986
        %v1029 = vsel %vm766, %v1024, %v987
        %1032 = vset.pattern.permute.xlu0 0
        %1033 = vperm.xlu0 %1032, %v868
        %v1034 = vpop.permute.xlu0 %1033
        %v1037 = vsel %vm794, %v866, 0
        %v1040 = vsel %vm754, %v997, 0
        %v1043 = vsel %vm754, %v998, 0
        %1045 = vmatprep.subr.bf16.mxu0 %v1013
        %1046 = vmatpush1.bf16.msra.mxu0 %v1010
        %1047 = vmatprep.subr.bf16.mxu0 %v1029
        %1048 = vmatpush1.bf16.msra.mxu0 %v1026
        %1049 = vmatprep.subr.bf16.mxu0 %v1043
        %1050 = vmatpush1.bf16.msra.mxu0 %v1040
        %1051 = vmatprep.subr.bf16.mxu0 0
        %1052 = vmatpush1.bf16.msra.mxu0 0
        %1053 = vmatprep.subr.bf16.mxu0 0
        %1054 = vmatpush1.bf16.msra.mxu0 0
        %1055 = vmatprep.subr.bf16.mxu0 0
        %1056 = vmatpush1.bf16.msra.mxu0 0
        %1057 = vmatprep.subr.bf16.mxu0 0
        %1058 = vmatpush1.bf16.msra.mxu0 0
        %1059 = vmatprep.subr.bf16.mxu0 0
        %1060 = vmatpush1.bf16.msra.mxu0 0
        %1061 = vmatprep.subr.bf16.mxu0 0
        %1062 = vmatpush1.bf16.msra.mxu0 0
        %1063 = vmatprep.subr.bf16.mxu0 0
        %1064 = vmatpush1.bf16.msra.mxu0 0
        %1065 = vmatprep.subr.bf16.mxu0 0
        %1066 = vmatpush1.bf16.msra.mxu0 0
        %1067 = vmatprep.subr.bf16.mxu0 0
        %1068 = vmatpush1.bf16.msra.mxu0 0
        %1069 = vmatprep.subr.bf16.mxu0 0
        %1070 = vmatpush1.bf16.msra.mxu0 0
        %1071 = vmatprep.subr.bf16.mxu0 0
        %1072 = vmatpush1.bf16.msra.mxu0 0
        %1073 = vmatprep.subr.bf16.mxu0 0
        %1074 = vmatpush1.bf16.msra.mxu0 0
        %1075 = vmatprep.subr.bf16.mxu0 0
        %1076 = vmatpush1.bf16.msra.mxu0 0
        %1077 = vmatprep.mubr.bf16.mxu0 0
        %1078 = vmatmul.mubr.bf16.gmra.mrb[0].mxu0 %v1037
        %v1079 = vpop.f32.mrb[0].mxu0
        %v1080 = vadd.f32 %v1034, %v1079
        %v1081 = vpop.f32.mrb[0].mxu0
        %v1082 = vadd.f32 %v1034, %v1081
        %v1083 = vpop.f32.mrb[0].mxu0
        %v1084 = vpop.f32.mrb[0].mxu0
        %1085 = vdwg.mxu0
        %v1086 = vmax.f32 %v1080, 0.0
        %v1087 = vmax.f32 %v1082, 0.0
        %v1088 = vmin.f32 %v1086, 20.0
        %v1089 = vmin.f32 %v1087, 20.0
        %v1092 = vrot.slane %v344, 4
        %v1093 = vrot.slane %v345, 4
        %v1096 = vadd.f32 %v1088, %v1092
        %v1097 = vadd.f32 %v1089, %v1093
        %v1098 = vmax.f32 %v1096, 0.0
        %v1099 = vmax.f32 %v1097, 0.0
        %v1100 = vmin.f32 %v1098, 20.0
        %v1101 = vmin.f32 %v1099, 20.0
        %v1104 = vrot.slane %v1100, 4
        %v1105 = vrot.slane %v1101, 4
        %v1108 = vsel %vm761, %v853, %v1104
        %v1109 = vsel %vm761, %v854, %v1105
        %1110 = vst [vmem:[%s309] sm:$0xff] %v1108
        %1111 = vst [vmem:[%s309 + $0x8] sm:$0xff] %v1109
        %v1112 = vadd.f32 %v1088, %v532
        %v1113 = vadd.f32 %v1089, %v533
        %v1114 = vpack.c.bf16 %v1112, %v1112
        %v1115 = vpack.c.bf16 %v1113, %v1113
        %s1116 = scalar_lea.vmem %s4, 4
        %v1117 = vld [vmem:[%s1116] sm:$0x3]
        %s1118 = scalar_lea.vmem %s5, 8
        %v1119 = vld [vmem:[%s1118] sm:$0xf]
        %1122 = vrot.lane.b32.xlu0 %v1114, 17
        %v1123 = vpop.permute.xlu0 %1122
        %1124 = vrot.lane.b32.xlu0 %v1115, 17
        %v1125 = vpop.permute.xlu0 %1124
        %v1126 = vsel %vm544, %v1123, %v1125
        %v1129 = vsel %vm547, 0, %v1123
        %v1132 = vsel %vm547, %v1125, 0
        %v1134 = vsel %vm569, %v1129, 0
        %v1135 = vsel %vm570, %v1126, 0
        %v1136 = vsel %vm593, %v1129, 0
        %v1137 = vsel %vm594, %v1126, 0
        %v1138 = vsel %vm595, %v1132, 0
        %v1139 = vsel %vm605, %v1129, 0
        %v1140 = vsel %vm606, %v1126, 0
        %v1141 = vsel %vm607, %v1132, 0
        %v1142 = vsel %vm617, %v1129, 0
        %v1143 = vsel %vm618, %v1126, 0
        %v1144 = vsel %vm619, %v1132, 0
        %v1145 = vsel %vm629, %v1129, 0
        %v1146 = vsel %vm630, %v1126, 0
        %v1147 = vsel %vm631, %v1132, 0
        %v1148 = vsel %vm641, %v1129, 0
        %v1149 = vsel %vm642, %v1126, 0
        %v1150 = vsel %vm643, %v1132, 0
        %v1153 = vrot.slane %v1129, 6
        %v1154 = vrot.slane %v1126, 6
        %v1155 = vrot.slane %v1132, 6
        %1156 = vrot.lane.b32.xlu0 %v1153, 127
        %v1157 = vpop.permute.xlu0 %1156
        %1158 = vrot.lane.b32.xlu0 %v1154, 127
        %v1159 = vpop.permute.xlu0 %1158
        %1160 = vrot.lane.b32.xlu0 %v1155, 127
        %v1161 = vpop.permute.xlu0 %1160
        %v1162 = vsel %vm658, %v1157, %v1159
        %v1163 = vsel %vm658, %v1159, %v1161
        %v1167 = vrot.slane %v1136, 4
        %v1168 = vrot.slane %v1137, 4
        %v1169 = vrot.slane %v1138, 4
        %1170 = vrot.lane.b32.xlu0 %v1167, 126
        %v1171 = vpop.permute.xlu0 %1170
        %1172 = vrot.lane.b32.xlu0 %v1168, 126
        %v1173 = vpop.permute.xlu0 %1172
        %1174 = vrot.lane.b32.xlu0 %v1169, 126
        %v1175 = vpop.permute.xlu0 %1174
        %v1176 = vsel %vm673, %v1171, %v1173
        %v1177 = vsel %vm673, %v1173, %v1175
        %v1181 = vrot.slane %v1139, 2
        %v1182 = vrot.slane %v1140, 2
        %v1183 = vrot.slane %v1141, 2
        %1184 = vrot.lane.b32.xlu0 %v1181, 112
        %v1185 = vpop.permute.xlu0 %1184
        %1186 = vrot.lane.b32.xlu0 %v1182, 112
        %v1187 = vpop.permute.xlu0 %1186
        %1188 = vrot.lane.b32.xlu0 %v1183, 112
        %v1189 = vpop.permute.xlu0 %1188
        %v1190 = vsel %vm688, %v1185, %v1187
        %v1191 = vsel %vm688, %v1187, %v1189
        %1192 = vrot.lane.b32.xlu0 %v1129, 111
        %v1193 = vpop.permute.xlu0 %1192
        %1194 = vrot.lane.b32.xlu0 %v1126, 111
        %v1195 = vpop.permute.xlu0 %1194
        %1196 = vrot.lane.b32.xlu0 %v1132, 111
        %v1197 = vpop.permute.xlu0 %1196
        %v1198 = vsel %vm697, %v1193, %v1195
        %v1199 = vsel %vm697, %v1195, %v1197
        %v1203 = vrot.slane %v1142, 6
        %v1204 = vrot.slane %v1143, 6
        %v1205 = vrot.slane %v1144, 6
        %1206 = vrot.lane.b32.xlu0 %v1203, 110
        %v1207 = vpop.permute.xlu0 %1206
        %1208 = vrot.lane.b32.xlu0 %v1204, 110
        %v1209 = vpop.permute.xlu0 %1208
        %1210 = vrot.lane.b32.xlu0 %v1205, 110
        %v1211 = vpop.permute.xlu0 %1210
        %v1212 = vsel %vm712, %v1207, %v1209
        %v1213 = vsel %vm712, %v1209, %v1211
        %v1217 = vrot.slane %v1145, 4
        %v1218 = vrot.slane %v1146, 4
        %v1219 = vrot.slane %v1147, 4
        %1220 = vrot.lane.b32.xlu0 %v1217, 96
        %v1221 = vpop.permute.xlu0 %1220
        %1222 = vrot.lane.b32.xlu0 %v1218, 96
        %v1223 = vpop.permute.xlu0 %1222
        %1224 = vrot.lane.b32.xlu0 %v1219, 96
        %v1225 = vpop.permute.xlu0 %1224
        %v1226 = vsel %vm727, %v1221, %v1223
        %v1227 = vsel %vm727, %v1223, %v1225
        %v1228 = vrot.slane %v1129, 2
        %v1229 = vrot.slane %v1126, 2
        %v1230 = vrot.slane %v1132, 2
        %1231 = vrot.lane.b32.xlu0 %v1228, 95
        %v1232 = vpop.permute.xlu0 %1231
        %1233 = vrot.lane.b32.xlu0 %v1229, 95
        %v1234 = vpop.permute.xlu0 %1233
        %1235 = vrot.lane.b32.xlu0 %v1230, 95
        %v1236 = vpop.permute.xlu0 %1235
        %v1237 = vsel %vm739, %v1232, %v1234
        %v1238 = vsel %vm739, %v1234, %v1236
        %1242 = vrot.lane.b32.xlu0 %v1148, 94
        %v1243 = vpop.permute.xlu0 %1242
        %1244 = vrot.lane.b32.xlu0 %v1149, 94
        %v1245 = vpop.permute.xlu0 %1244
        %1246 = vrot.lane.b32.xlu0 %v1150, 94
        %v1247 = vpop.permute.xlu0 %1246
        %v1248 = vsel %vm751, %v1243, %v1245
        %v1249 = vsel %vm751, %v1245, %v1247
        %v1252 = vsel %vm754, %v1134, %v1162
        %v1255 = vsel %vm754, %v1135, %v1163
        %v1257 = vsel %vm761, %v1252, %v1176
        %v1259 = vsel %vm761, %v1255, %v1177
        %v1261 = vsel %vm766, %v1257, %v1190
        %v1264 = vsel %vm766, %v1259, %v1191
        %v1268 = vsel %vm754, %v1198, %v1212
        %v1271 = vsel %vm754, %v1199, %v1213
        %v1273 = vsel %vm761, %v1268, %v1226
        %v1275 = vsel %vm761, %v1271, %v1227
        %v1277 = vsel %vm766, %v1273, %v1237
        %v1280 = vsel %vm766, %v1275, %v1238
        %1283 = vset.pattern.permute.xlu0 0
        %1284 = vperm.xlu0 %1283, %v1119
        %v1285 = vpop.permute.xlu0 %1284
        %v1288 = vsel %vm794, %v1117, 0
        %v1291 = vsel %vm754, %v1248, 0
        %v1294 = vsel %vm754, %v1249, 0
        %1296 = vmatprep.subr.bf16.mxu0 %v1264
        %1297 = vmatpush1.bf16.msra.mxu0 %v1261
        %1298 = vmatprep.subr.bf16.mxu0 %v1280
        %1299 = vmatpush1.bf16.msra.mxu0 %v1277
        %1300 = vmatprep.subr.bf16.mxu0 %v1294
        %1301 = vmatpush1.bf16.msra.mxu0 %v1291
        %1302 = vmatprep.subr.bf16.mxu0 0
        %1303 = vmatpush1.bf16.msra.mxu0 0
        %1304 = vmatprep.subr.bf16.mxu0 0
        %1305 = vmatpush1.bf16.msra.mxu0 0
        %1306 = vmatprep.subr.bf16.mxu0 0
        %1307 = vmatpush1.bf16.msra.mxu0 0
        %1308 = vmatprep.subr.bf16.mxu0 0
        %1309 = vmatpush1.bf16.msra.mxu0 0
        %1310 = vmatprep.subr.bf16.mxu0 0
        %1311 = vmatpush1.bf16.msra.mxu0 0
        %1312 = vmatprep.subr.bf16.mxu0 0
        %1313 = vmatpush1.bf16.msra.mxu0 0
        %1314 = vmatprep.subr.bf16.mxu0 0
        %1315 = vmatpush1.bf16.msra.mxu0 0
        %1316 = vmatprep.subr.bf16.mxu0 0
        %1317 = vmatpush1.bf16.msra.mxu0 0
        %1318 = vmatprep.subr.bf16.mxu0 0
        %1319 = vmatpush1.bf16.msra.mxu0 0
        %1320 = vmatprep.subr.bf16.mxu0 0
        %1321 = vmatpush1.bf16.msra.mxu0 0
        %1322 = vmatprep.subr.bf16.mxu0 0
        %1323 = vmatpush1.bf16.msra.mxu0 0
        %1324 = vmatprep.subr.bf16.mxu0 0
        %1325 = vmatpush1.bf16.msra.mxu0 0
        %1326 = vmatprep.subr.bf16.mxu0 0
        %1327 = vmatpush1.bf16.msra.mxu0 0
        %1328 = vmatprep.mubr.bf16.mxu0 0
        %1329 = vmatmul.mubr.bf16.gmra.mrb[0].mxu0 %v1288
        %v1330 = vpop.f32.mrb[0].mxu0
        %v1331 = vadd.f32 %v1285, %v1330
        %v1332 = vpop.f32.mrb[0].mxu0
        %v1333 = vadd.f32 %v1285, %v1332
        %v1334 = vpop.f32.mrb[0].mxu0
        %v1335 = vpop.f32.mrb[0].mxu0
        %1336 = vdwg.mxu0
        %v1337 = vmax.f32 %v1331, 0.0
        %v1338 = vmax.f32 %v1333, 0.0
        %v1339 = vmin.f32 %v1337, 20.0
        %v1340 = vmin.f32 %v1338, 20.0
        %v1341 = vadd.f32 %v1339, %v346
        %v1342 = vadd.f32 %v1340, %v347
        %v1343 = vmax.f32 %v1341, 0.0
        %v1344 = vmax.f32 %v1342, 0.0
        %v1345 = vmin.f32 %v1343, 20.0
        %v1346 = vmin.f32 %v1344, 20.0
        %v1347 = vadd.f32 %v532, %v346
        %v1348 = vadd.f32 %v533, %v347
        %v1349 = vmax.f32 %v1347, 0.0
        %v1350 = vmax.f32 %v1348, 0.0
        %v1351 = vmin.f32 %v1349, 20.0
        %v1352 = vmin.f32 %v1350, 20.0
        %v1353 = vsel %vm761, %v1345, %v1351
        %v1354 = vsel %vm761, %v1346, %v1352
        %1355 = vst [vmem:[%s309 + $0x10] sm:$0xff] %v1353
        %1356 = vst [vmem:[%s309 + $0x18] sm:$0xff] %v1354
        %s1357 = sand.u32 %s170, 1
        %s1358 = scalar_lea.sflag [#allocation4], %s1357
        %s1359 = sand.u32 %s170, 1
        %s1360 = smul.addr %s1359, 32
        %s1361 = scalar_lea.vmem [#allocation7], %s1360
        // Predicated region
        $region53: #{tpu_custom_call.1} parent=43 // pred_check
          %p1362 = pneg %p180
        $region54: #{tpu_custom_call.1} parent=43 // pred_check_branch
          %1364 = sbr.rel (%p1362) target = $region56
        $region55: #{tpu_custom_call.1} parent=43 // pred_region
          %s1366 = ssub.s32 512, 512
          %1367 = vsyncadd %s1358, %s1366
          %s1368 = smul.addr %s26, 4
          %s1369 = smul.addr %s1368, 128
          %s1370 = scalar_lea.hbm %s6, %s1369
          %s1371 = sshll.u32 %s1361, 4
          %s1372 = int_to_ptr.vmem [resolvable:$true] %s1371
          %1377 = dma.vmem_to_hbm [thread:$0]  %s1372, 512, %s1370, %s1358, 256, 256, 16
        $region56: #{tpu_custom_call.1} parent=43 // pred_fallthru
          _
      $region44: #{tpu_custom_call.1} parent=5 // pred_fallthru
        _
      %p1378 = scmp.le.s32.totalorder 2, %s21
      // Predicated region
      $region57: #{tpu_custom_call.1} parent=5 // pred_check
        %p1379 = pneg %p1378
      $region58: #{tpu_custom_call.1} parent=5 // pred_check_branch
        %1381 = sbr.rel (%p1379) target = $region60
      $region59: #{tpu_custom_call.1} parent=5 // pred_region
        %s1382 = ssub.s32 %s21, 2
        // Predicated region
        $region61: #{tpu_custom_call.1} parent=59 // pred_check
          %p1383 = pneg %p186
        $region62: #{tpu_custom_call.1} parent=59 // pred_check_branch
          %1385 = sbr.rel (%p1383) target = $region64
        $region63: #{tpu_custom_call.1} parent=59 // pred_region
          %s1386 = sand.u32 %s171, 1
          %s1387 = scalar_lea.sflag [#allocation4], %s1386
          %s1388 = sand.u32 %s171, 1
          %s1389 = smul.addr %s1388, 32
          %s1390 = scalar_lea.vmem [#allocation7], %s1389
          %1391 = dma.done %s1387, 512
        $region64: #{tpu_custom_call.1} parent=59 // pred_fallthru
          _
      $region60: #{tpu_custom_call.1} parent=5 // pred_fallthru
        _
    $region6: #{tpu_custom_call.1} parent=1 // loop_footer
      %s25 = sadd.s32 1, %s21
    $region7: #{tpu_custom_call.1} parent=1 // loop_footer_branch
      %20 = sbr.rel target = $region3
    $region8: #{tpu_custom_call.1} parent=1 // loop_exit
      _
    %1392 = vsyncpa [#allocation3], 1
    %s1393 = scalar_lea.sflag [#allocation3], 1
    %1394 = vsyncpa %s1393, 1
    %1395 = vsyncpa [#allocation6], 1
    %s1396 = scalar_lea.sflag [#allocation6], 1
    %1397 = vsyncpa %s1396, 1
    %1398 = vsyncpa [#allocation4], 1
    %s1399 = scalar_lea.sflag [#allocation4], 1
    %1400 = vsyncpa %s1399, 1

</llo_original>
